<compile_context>
chip_gen: v6e
topology: v6e:2x2x1
jax: 0.10.0
libtpu: 0.0.40
codegen_flags: <defaults>
</compile_context>

<pallas_src>
import functools

import jax
import jax.numpy as jnp
from jax import lax
from jax.experimental import pallas as pl
from jax.experimental.pallas import tpu as pltpu


def _mnrl_kernel(a_ref, b_ref, inv_a_ref, inv_b_ref, bias_ref, o_ref,
                 m_scr, l_scr, d_scr, *, scale: float):
    i = pl.program_id(0)                      # N-tile (parallel)
    j = pl.program_id(1)                      # M-tile (reduction, online softmax)

    @pl.when(j == 0)
    def _init():
        m_scr[...] = jnp.full_like(m_scr, -jnp.inf)
        l_scr[...] = jnp.zeros_like(l_scr)
        d_scr[...] = jnp.zeros_like(d_scr)

    a = a_ref[...]                            # (tn, D) input dtype (bf16/f32) -> MXU
    b = b_ref[...]                            # (tm, D)

    # Raw similarity on the MXU, contracting the last dims directly (no .T).
    raw = lax.dot_general(a, b,
                          dimension_numbers=(((1,), (1,)), ((), ())),
                          preferred_element_type=jnp.float32)     # (tn, tm) f32

    # Fold cosine normalization + scale in as row / column scalings.
    row_scale = inv_a_ref[...] * scale        # (tn, 1) f32
    s = raw * row_scale * inv_b_ref[...] + bias_ref[...]          # (tn, tm) f32

    # Online softmax (log-sum-exp) accumulation across M tiles.
    m_prev = m_scr[...]                                           # (tn, 1)
    m_new = jnp.maximum(m_prev, jnp.max(s, axis=-1, keepdims=True))
    alpha = jnp.exp(m_prev - m_new)
    l_scr[...] = alpha * l_scr[...] + jnp.sum(jnp.exp(s - m_new),
                                              axis=-1, keepdims=True)
    m_scr[...] = m_new

    # Label logit: labels = arange(N); with tn == tm the diagonal block for
    # N-tile i is exactly M-tile j == i. Compute it directly (no iota masks).
    @pl.when(j == i)
    def _diag():
        af = a.astype(jnp.float32)
        bf = b.astype(jnp.float32)
        dot_ab = jnp.sum(af * bf, axis=-1, keepdims=True)         # (tn, 1)
        inv_b_diag = 1.0 / jnp.maximum(
            jnp.sqrt(jnp.sum(bf * bf, axis=-1, keepdims=True)), 1e-12)
        d_scr[...] = dot_ab * row_scale * inv_b_diag

    @pl.when(j == pl.num_programs(1) - 1)
    def _finalize():
        # per-row cross-entropy: logsumexp(scores_row) - scores_row[label]
        o_ref[...] = m_scr[...] + jnp.log(l_scr[...]) - d_scr[...]


def mnrl_loss(embedding_a: jax.Array, embedding_b: jax.Array,
              scale: float = 20.0, block: int = 128) -> jax.Array:
    """Pallas-backed MultipleNegativeRankingLoss forward. Returns scalar f32."""
    n, d = embedding_a.shape
    m, d2 = embedding_b.shape
    assert d == d2, "anchor / candidate hidden dims must match"
    assert n <= m, "labels = arange(N) must index valid candidate columns (M >= N)"
    assert block % 128 == 0, "block must be lane-aligned (multiple of 128)"

    n_pad = ((n + block - 1) // block) * block
    m_pad = ((m + block - 1) // block) * block

    a_p = jnp.pad(embedding_a, ((0, n_pad - n), (0, 0)))
    b_p = jnp.pad(embedding_b, ((0, m_pad - m), (0, 0)))

    # Norm factors computed once (f32), matching torch F.normalize: x / max(||x||, eps)
    a32 = a_p.astype(jnp.float32)
    b32 = b_p.astype(jnp.float32)
    inv_a = 1.0 / jnp.maximum(
        jnp.sqrt(jnp.sum(a32 * a32, axis=-1, keepdims=True)), 1e-12)   # (n_pad, 1)
    inv_b = (1.0 / jnp.maximum(
        jnp.sqrt(jnp.sum(b32 * b32, axis=-1)), 1e-12))[None, :]        # (1, m_pad)
    # Additive mask that kills padded candidate columns inside the softmax.
    col_bias = jnp.where(jnp.arange(m_pad) < m, 0.0, -1e30
                         )[None, :].astype(jnp.float32)                # (1, m_pad)

    grid = (n_pad // block, m_pad // block)

    per_row = pl.pallas_call(
        functools.partial(_mnrl_kernel, scale=float(scale)),
        out_shape=jax.ShapeDtypeStruct((n_pad, 1), jnp.float32),
        grid_spec=pltpu.PrefetchScalarGridSpec(
            num_scalar_prefetch=0,
            grid=grid,
            in_specs=[
                pl.BlockSpec((block, d), lambda i, j: (i, 0)),   # a tile
                pl.BlockSpec((block, d), lambda i, j: (j, 0)),   # b tile
                pl.BlockSpec((block, 1), lambda i, j: (i, 0)),   # inv_norm(a)
                pl.BlockSpec((1, block), lambda i, j: (0, j)),   # inv_norm(b)
                pl.BlockSpec((1, block), lambda i, j: (0, j)),   # column mask bias
            ],
            out_specs=pl.BlockSpec((block, 1), lambda i, j: (i, 0)),
            scratch_shapes=[
                pltpu.VMEM((block, 1), jnp.float32),   # running row max
                pltpu.VMEM((block, 1), jnp.float32),   # running exp-sum
                pltpu.VMEM((block, 1), jnp.float32),   # diagonal (label) logit
            ],
        ),
        compiler_params=pltpu.CompilerParams(
            dimension_semantics=("parallel", "arbitrary"),
        ),
    )(a_p, b_p, inv_a, inv_b, col_bias)

    # reduction='mean' over the real (unpadded) batch rows.
    return jnp.mean(per_row[:n, 0])


def _mnrl_reference(embedding_a, embedding_b, scale=20.0):
    a = embedding_a.astype(jnp.float32)
    b = embedding_b.astype(jnp.float32)
    a_n = a / jnp.maximum(jnp.linalg.norm(a, axis=-1, keepdims=True), 1e-12)
    b_n = b / jnp.maximum(jnp.linalg.norm(b, axis=-1, keepdims=True), 1e-12)
    scores = a_n @ b_n.T * scale
    labels = jnp.arange(scores.shape[0])
    logprobs = jax.nn.log_softmax(scores, axis=-1)
    return -jnp.mean(logprobs[jnp.arange(scores.shape[0]), labels])


if __name__ == "__main__":
    # Deterministic example: 160 anchor/positive pairs plus 160 extra hard
    # negatives (reps[1:] concatenated), hidden=128.  With block=128 this
    # pads N to 256 and M to 384, exercising the parallel N grid (2 tiles),
    # the online-softmax M reduction (3 tiles) and the padding masks.
    key = jax.random.PRNGKey(0)
    k_a, k_p, k_n = jax.random.split(key, 3)

    N, D = 160, 128
    anchors = jax.random.normal(k_a, (N, D), dtype=jnp.float32)
    positives = anchors + 0.1 * jax.random.normal(k_p, (N, D), dtype=jnp.float32)
    hard_negs = jax.random.normal(k_n, (N, D), dtype=jnp.float32)

    embedding_a = anchors                                   # (160, 128)
    embedding_b = jnp.concatenate([positives, hard_negs])   # (320, 128)

    loss = mnrl_loss(embedding_a, embedding_b, scale=20.0)
    loss = jax.block_until_ready(loss)

    ref = _mnrl_reference(embedding_a, embedding_b, scale=20.0)
    assert jnp.allclose(loss, ref, atol=5e-4, rtol=5e-4), (loss, ref)

    print("KERNEL_OK")
</pallas_src>

<mosaic_0001>
module attributes {stable_mosaic.version = 11 : i64} {
  func.func @_mnrl_kernel(%arg0: i32, %arg1: i32, %arg2: memref<128x128xf32, #tpu.memory_space<vmem>>, %arg3: memref<128x128xf32, #tpu.memory_space<vmem>>, %arg4: memref<128x1xf32, #tpu.memory_space<vmem>>, %arg5: memref<1x128xf32, #tpu.memory_space<vmem>>, %arg6: memref<1x128xf32, #tpu.memory_space<vmem>>, %arg7: memref<128x1xf32, #tpu.memory_space<vmem>>, %arg8: memref<128x1xf32, #tpu.memory_space<vmem>>, %arg9: memref<128x1xf32, #tpu.memory_space<vmem>>, %arg10: memref<128x1xf32, #tpu.memory_space<vmem>>) attributes {dimension_semantics = [#tpu.dimension_semantics<parallel>, #tpu.dimension_semantics<arbitrary>], iteration_bounds = array<i64: 2, 3>, scalar_prefetch = 0 : i64, scratch_operands = 3 : i64, tpu.core_type = #tpu.core_type<tc>, window_params = [{transform_indices = @transform_0, window_bounds = array<i64: 128, 128>}, {transform_indices = @transform_1, window_bounds = array<i64: 128, 128>}, {transform_indices = @transform_2, window_bounds = array<i64: 128, 1>}, {transform_indices = @transform_3, window_bounds = array<i64: 1, 128>}, {transform_indices = @transform_4, window_bounds = array<i64: 1, 128>}, {transform_indices = @transform_5, window_bounds = array<i64: 128, 1>}]} {
    %c0_i32 = arith.constant 0 : i32
    %0 = arith.cmpi eq, %arg1, %c0_i32 : i32
    %1 = arith.extui %0 : i1 to i32
    %c0_i32_0 = arith.constant 0 : i32
    %2 = arith.cmpi ne, %1, %c0_i32_0 : i32
    scf.if %2 {
      %cst_23 = arith.constant 0xFF800000 : f32
      %39 = vector.broadcast %cst_23 : f32 to vector<128x1xf32>
      %c0_24 = arith.constant 0 : index
      %c0_25 = arith.constant 0 : index
      %40 = vector.load %arg8[%c0_24, %c0_25] : memref<128x1xf32, #tpu.memory_space<vmem>>, vector<128x1xf32>
      tpu.vector_store %arg8[%c0_24, %c0_25], %39 {strides = array<i32>} : memref<128x1xf32, #tpu.memory_space<vmem>>, vector<128x1xf32>,
      %cst_26 = arith.constant 0.000000e+00 : f32
      %41 = vector.broadcast %cst_26 : f32 to vector<128x1xf32>
      %c0_27 = arith.constant 0 : index
      %c0_28 = arith.constant 0 : index
      %42 = vector.load %arg9[%c0_27, %c0_28] : memref<128x1xf32, #tpu.memory_space<vmem>>, vector<128x1xf32>
      tpu.vector_store %arg9[%c0_27, %c0_28], %41 {strides = array<i32>} : memref<128x1xf32, #tpu.memory_space<vmem>>, vector<128x1xf32>,
      %cst_29 = arith.constant 0.000000e+00 : f32
      %43 = vector.broadcast %cst_29 : f32 to vector<128x1xf32>
      %c0_30 = arith.constant 0 : index
      %c0_31 = arith.constant 0 : index
      %44 = vector.load %arg10[%c0_30, %c0_31] : memref<128x1xf32, #tpu.memory_space<vmem>>, vector<128x1xf32>
      tpu.vector_store %arg10[%c0_30, %c0_31], %43 {strides = array<i32>} : memref<128x1xf32, #tpu.memory_space<vmem>>, vector<128x1xf32>,
    } else {
    }
    %c0 = arith.constant 0 : index
    %c0_1 = arith.constant 0 : index
    %3 = vector.load %arg2[%c0, %c0_1] : memref<128x128xf32, #tpu.memory_space<vmem>>, vector<128x128xf32>
    %c0_2 = arith.constant 0 : index
    %c0_3 = arith.constant 0 : index
    %4 = vector.load %arg3[%c0_2, %c0_3] : memref<128x128xf32, #tpu.memory_space<vmem>>, vector<128x128xf32>
    %cst = arith.constant dense<0.000000e+00> : vector<128x128xf32>
    %5 = tpu.matmul %3, %4, %cst {dimension_numbers = #tpu.dot_dimension_numbers<[1], [1], [0], [0], [0, 0, 1, 0], [], []>} : vector<128x128xf32>, vector<128x128xf32>, vector<128x128xf32> -> vector<128x128xf32>
    %c0_4 = arith.constant 0 : index
    %c0_5 = arith.constant 0 : index
    %6 = vector.load %arg4[%c0_4, %c0_5] : memref<128x1xf32, #tpu.memory_space<vmem>>, vector<128x1xf32>
    %cst_6 = arith.constant 2.000000e+01 : f32
    %7 = vector.broadcast %cst_6 : f32 to vector<128x1xf32>
    %8 = arith.mulf %6, %7 : vector<128x1xf32>
    %9 = vector.broadcast %8 : vector<128x1xf32> to vector<128x128xf32>
    %10 = arith.mulf %5, %9 : vector<128x128xf32>
    %c0_7 = arith.constant 0 : index
    %c0_8 = arith.constant 0 : index
    %11 = vector.load %arg5[%c0_7, %c0_8] : memref<1x128xf32, #tpu.memory_space<vmem>>, vector<1x128xf32>
    %12 = vector.broadcast %11 : vector<1x128xf32> to vector<128x128xf32>
    %13 = arith.mulf %10, %12 : vector<128x128xf32>
    %c0_9 = arith.constant 0 : index
    %c0_10 = arith.constant 0 : index
    %14 = vector.load %arg6[%c0_9, %c0_10] : memref<1x128xf32, #tpu.memory_space<vmem>>, vector<1x128xf32>
    %15 = vector.broadcast %14 : vector<1x128xf32> to vector<128x128xf32>
    %16 = arith.addf %13, %15 : vector<128x128xf32>
    %c0_11 = arith.constant 0 : index
    %c0_12 = arith.constant 0 : index
    %17 = vector.load %arg8[%c0_11, %c0_12] : memref<128x1xf32, #tpu.memory_space<vmem>>, vector<128x1xf32>
    %cst_13 = arith.constant dense<0xFF800000> : vector<128xf32>
    %18 = vector.multi_reduction <maximumf>, %16, %cst_13 [1] : vector<128x128xf32> to vector<128xf32>
    %19 = vector.shape_cast %18 : vector<128xf32> to vector<128x1xf32>
    %20 = arith.maximumf %17, %19 : vector<128x1xf32>
    %21 = arith.subf %17, %20 : vector<128x1xf32>
    %22 = math.exp %21 : vector<128x1xf32>
    %c0_14 = arith.constant 0 : index
    %c0_15 = arith.constant 0 : index
    %23 = vector.load %arg9[%c0_14, %c0_15] : memref<128x1xf32, #tpu.memory_space<vmem>>, vector<128x1xf32>
    %24 = arith.mulf %22, %23 : vector<128x1xf32>
    %25 = vector.broadcast %20 : vector<128x1xf32> to vector<128x128xf32>
    %26 = arith.subf %16, %25 : vector<128x128xf32>
    %27 = math.exp %26 : vector<128x128xf32>
    %cst_16 = arith.constant dense<0.000000e+00> : vector<128xf32>
    %28 = vector.multi_reduction <add>, %27, %cst_16 [1] : vector<128x128xf32> to vector<128xf32>
    %29 = vector.shape_cast %28 : vector<128xf32> to vector<128x1xf32>
    %30 = arith.addf %24, %29 : vector<128x1xf32>
    %c0_17 = arith.constant 0 : index
    %c0_18 = arith.constant 0 : index
    %31 = vector.load %arg9[%c0_17, %c0_18] : memref<128x1xf32, #tpu.memory_space<vmem>>, vector<128x1xf32>
    tpu.vector_store %arg9[%c0_17, %c0_18], %30 {strides = array<i32>} : memref<128x1xf32, #tpu.memory_space<vmem>>, vector<128x1xf32>,
    %c0_19 = arith.constant 0 : index
    %c0_20 = arith.constant 0 : index
    %32 = vector.load %arg8[%c0_19, %c0_20] : memref<128x1xf32, #tpu.memory_space<vmem>>, vector<128x1xf32>
    tpu.vector_store %arg8[%c0_19, %c0_20], %20 {strides = array<i32>} : memref<128x1xf32, #tpu.memory_space<vmem>>, vector<128x1xf32>,
    %33 = arith.cmpi eq, %arg1, %arg0 : i32
    %34 = arith.extui %33 : i1 to i32
    %c0_i32_21 = arith.constant 0 : i32
    %35 = arith.cmpi ne, %34, %c0_i32_21 : i32
    scf.if %35 {
      %39 = arith.mulf %3, %4 : vector<128x128xf32>
      %cst_23 = arith.constant dense<0.000000e+00> : vector<128xf32>
      %40 = vector.multi_reduction <add>, %39, %cst_23 [1] : vector<128x128xf32> to vector<128xf32>
      %41 = vector.shape_cast %40 : vector<128xf32> to vector<128x1xf32>
      %42 = arith.mulf %4, %4 : vector<128x128xf32>
      %cst_24 = arith.constant dense<0.000000e+00> : vector<128xf32>
      %43 = vector.multi_reduction <add>, %42, %cst_24 [1] : vector<128x128xf32> to vector<128xf32>
      %44 = vector.shape_cast %43 : vector<128xf32> to vector<128x1xf32>
      %45 = math.sqrt %44 : vector<128x1xf32>
      %cst_25 = arith.constant 9.99999996E-13 : f32
      %46 = vector.broadcast %cst_25 : f32 to vector<128x1xf32>
      %47 = arith.maximumf %45, %46 : vector<128x1xf32>
      %cst_26 = arith.constant 1.000000e+00 : f32
      %48 = vector.broadcast %cst_26 : f32 to vector<128x1xf32>
      %49 = arith.divf %48, %47 : vector<128x1xf32>
      %50 = arith.mulf %41, %8 : vector<128x1xf32>
      %51 = arith.mulf %50, %49 : vector<128x1xf32>
      %c0_27 = arith.constant 0 : index
      %c0_28 = arith.constant 0 : index
      %52 = vector.load %arg10[%c0_27, %c0_28] : memref<128x1xf32, #tpu.memory_space<vmem>>, vector<128x1xf32>
      tpu.vector_store %arg10[%c0_27, %c0_28], %51 {strides = array<i32>} : memref<128x1xf32, #tpu.memory_space<vmem>>, vector<128x1xf32>,
    } else {
    }
    %c2_i32 = arith.constant 2 : i32
    %36 = arith.cmpi eq, %arg1, %c2_i32 : i32
    %37 = arith.extui %36 : i1 to i32
    %c0_i32_22 = arith.constant 0 : i32
    %38 = arith.cmpi ne, %37, %c0_i32_22 : i32
    scf.if %38 {
      %c0_23 = arith.constant 0 : index
      %c0_24 = arith.constant 0 : index
      %39 = vector.load %arg8[%c0_23, %c0_24] : memref<128x1xf32, #tpu.memory_space<vmem>>, vector<128x1xf32>
      %c0_25 = arith.constant 0 : index
      %c0_26 = arith.constant 0 : index
      %40 = vector.load %arg9[%c0_25, %c0_26] : memref<128x1xf32, #tpu.memory_space<vmem>>, vector<128x1xf32>
      %41 = math.log %40 : vector<128x1xf32>
      %42 = arith.addf %39, %41 : vector<128x1xf32>
      %c0_27 = arith.constant 0 : index
      %c0_28 = arith.constant 0 : index
      %43 = vector.load %arg10[%c0_27, %c0_28] : memref<128x1xf32, #tpu.memory_space<vmem>>, vector<128x1xf32>
      %44 = arith.subf %42, %43 : vector<128x1xf32>
      %c0_29 = arith.constant 0 : index
      %c0_30 = arith.constant 0 : index
      %45 = vector.load %arg7[%c0_29, %c0_30] : memref<128x1xf32, #tpu.memory_space<vmem>>, vector<128x1xf32>
      tpu.vector_store %arg7[%c0_29, %c0_30], %44 {strides = array<i32>} : memref<128x1xf32, #tpu.memory_space<vmem>>, vector<128x1xf32>,
    } else {
    }
    return
  }
  func.func @transform_0(%arg0: i32, %arg1: i32) -> (i32, i32) {
    %c0_i32 = arith.constant 0 : i32
    %c0_i32_0 = arith.constant 0 : i32
    return %arg0, %c0_i32 : i32, i32
  }
  func.func @transform_1(%arg0: i32, %arg1: i32) -> (i32, i32) {
    %c0_i32 = arith.constant 0 : i32
    %c0_i32_0 = arith.constant 0 : i32
    return %arg1, %c0_i32 : i32, i32
  }
  func.func @transform_2(%arg0: i32, %arg1: i32) -> (i32, i32) {
    %c0_i32 = arith.constant 0 : i32
    %c0_i32_0 = arith.constant 0 : i32
    return %arg0, %c0_i32 : i32, i32
  }
  func.func @transform_3(%arg0: i32, %arg1: i32) -> (i32, i32) {
    %c0_i32 = arith.constant 0 : i32
    %c0_i32_0 = arith.constant 0 : i32
    return %c0_i32, %arg1 : i32, i32
  }
  func.func @transform_4(%arg0: i32, %arg1: i32) -> (i32, i32) {
    %c0_i32 = arith.constant 0 : i32
    %c0_i32_0 = arith.constant 0 : i32
    return %c0_i32, %arg1 : i32, i32
  }
  func.func @transform_5(%arg0: i32, %arg1: i32) -> (i32, i32) {
    %c0_i32 = arith.constant 0 : i32
    %c0_i32_0 = arith.constant 0 : i32
    return %arg0, %c0_i32 : i32, i32
  }
}

</mosaic_0001>

<llo_original>
// kernel: tpu_custom_call.1
$region0: #{tpu_custom_call.1}
  #allocation0 [shape = 'u32[]', space=smem, size = 0x4, offset = 0x4, fixed_abs, tag = 'smem constant byte address 0x4 - core index']
  #allocation1 [shape = 'u32[144,128]{1,0:T(1,128)}', space=vmem, size = 0x12000, scoped, tag = 'internal scratch']
  #allocation2 [shape = 'f32[128,1]{1,0:T(8,128)}', space=vmem, size = 0x10000, scoped, tag = 'scratch operand']
  #allocation3 [shape = 'f32[128,1]{1,0:T(8,128)}', space=vmem, size = 0x10000, scoped, tag = 'scratch operand']
  #allocation4 [shape = 'f32[128,1]{1,0:T(8,128)}', space=vmem, size = 0x10000, scoped, tag = 'scratch operand']
  %s0 = inlined_call_operand.vmem [shape: f32[256,128], index: 0, kind: input, shape index: {}]
  %s1 = inlined_call_operand.hbm [shape: f32[384,128], index: 1, kind: input, shape index: {}]
  %s2 = inlined_call_operand.vmem [shape: f32[256,1], index: 2, kind: input, shape index: {}]
  %s3 = inlined_call_operand.vmem [shape: f32[1,384], index: 3, kind: input, shape index: {}]
  %s4 = inlined_call_operand.vmem [shape: f32[1,384], index: 4, kind: input, shape index: {}]
  %s5 = inlined_call_operand.vmem [shape: f32[256,1], index: 5, kind: output, shape index: {}]
  %s6 = sld [smem:[#allocation0]]
  $region69: #{tpu_custom_call.1} parent=0
    _
  %s8 = ssub.s32 1, %s6
  %s9 = scalar_select 0, %s8, %s6
  $region1: #{tpu_custom_call.1} parent=0
    #allocation5 [shape = 'u8[131072]{0}', space=vmem, size = 0x20000, scoped, tag = 'input window, operand 1']
    #allocation6 [shape = 's32[2]{0}', space=sflag, size = 0x8, scoped, tag = 'scoped memory for tpu_custom_call.1']
    %10 = vsyncpa [#allocation6], 0
    %s11 = scalar_lea.sflag [#allocation6], 1
    %12 = vsyncpa %s11, 0
    loop: start=0, step=1, limit=8
    $region2: #{tpu_custom_call.1} parent=1 // loop_pre_header
      _
    $region3: #{tpu_custom_call.1} parent=1 // loop_header
      %s14 = sphi 0, %s18
      %p15 = scmp.ge.s32.totalorder %s14, 8
      %s21 = sphi 0, %s33
      %s22 = sphi 0, %s29
      %s23 = sphi 0, %s21
      %s24 = sphi 0, %s22
      %s25 = sphi 0, %s23
      %s26 = sphi 0, %s24
      %s36 = sphi 0, %s38
      %s39 = sphi 0, %s36
      %s40 = sphi 0, %s39
      %s56 = sphi 0, %s40
      %s62 = sphi 0, %s64
      %s65 = sphi 0, %s62
      %s66 = sphi 0, %s65
      %s82 = sphi 0, %s66
      %s88 = sphi 0, %s90
      %s91 = sphi 0, %s88
      %s92 = sphi 0, %s91
      %s108 = sphi 0, %s92
      %s114 = sphi 0, %s116
      %s117 = sphi 0, %s114
      %s118 = sphi 0, %s117
      %s134 = sphi 0, %s118
      %s140 = sphi 0, %s142
      %s143 = sphi 0, %s140
      %s144 = sphi 0, %s143
      %s160 = sphi 0, %s144
      %s166 = sphi 0, %s168
      %s169 = sphi 0, %s166
      %s170 = sphi 0, %s169
      %s186 = sphi 0, %s170
    $region4: #{tpu_custom_call.1} parent=1 // loop_header_branch
      %17 = sbr.rel (%p15) target = $region8
    $region5: #{tpu_custom_call.1} parent=1 // loop_body
      %s19 = ssub.s32 %s14, 1
      %s20 = ssub.s32 %s14, 2
      %s27 = sadd.s32 1, %s22
      %p28 = scmp.ge.s32.totalorder %s27, 3
      %s29 = scalar_select %p28, 0, %s27
      %s30 = sadd.s32 1, %s21
      %s31 = scalar_select %p28, %s30, %s21
      %p32 = scmp.ge.s32.totalorder %s31, 2
      %s33 = scalar_select %p32, 0, %s31
      %s34 = ssub.s32 %s21, %s33
      %p35 = scmp.eq.s32.totalorder %s34, 0
      %s37 = sadd.s32 %s36, 1
      %s38 = scalar_select %p35, %s36, %s37
      %p41 = pneg %p35
      %p42 = scmp.eq.s32.totalorder %s14, 5
      %p43 = por %p41, %p42
      %p44 = scmp.ne.s32.totalorder %s36, %s39
      %p45 = scmp.eq.s32.totalorder %s14, 0
      %p46 = por %p44, %p45
      %p47 = scmp.ne.s32.totalorder %s36, %s39
      %p48 = scmp.eq.s32.totalorder %s19, 5
      %p49 = por %p47, %p48
      %p50 = scmp.ne.s32.totalorder %s39, %s40
      %p51 = scmp.eq.s32.totalorder %s19, 0
      %p52 = por %p50, %p51
      %p53 = scmp.ne.s32.totalorder %s39, %s40
      %p54 = scmp.eq.s32.totalorder %s20, 5
      %p55 = por %p53, %p54
      %p57 = scmp.ne.s32.totalorder %s40, %s56
      %p58 = scmp.eq.s32.totalorder %s20, 0
      %p59 = por %p57, %p58
      %s60 = ssub.s32 %s22, %s29
      %p61 = scmp.eq.s32.totalorder %s60, 0
      %s63 = sadd.s32 %s62, 1
      %s64 = scalar_select %p61, %s62, %s63
      %p67 = pneg %p61
      %p68 = scmp.eq.s32.totalorder %s14, 5
      %p69 = por %p67, %p68
      %p70 = scmp.ne.s32.totalorder %s62, %s65
      %p71 = scmp.eq.s32.totalorder %s14, 0
      %p72 = por %p70, %p71
      %p73 = scmp.ne.s32.totalorder %s62, %s65
      %p74 = scmp.eq.s32.totalorder %s19, 5
      %p75 = por %p73, %p74
      %p76 = scmp.ne.s32.totalorder %s65, %s66
      %p77 = scmp.eq.s32.totalorder %s19, 0
      %p78 = por %p76, %p77
      %p79 = scmp.ne.s32.totalorder %s65, %s66
      %p80 = scmp.eq.s32.totalorder %s20, 5
      %p81 = por %p79, %p80
      %p83 = scmp.ne.s32.totalorder %s66, %s82
      %p84 = scmp.eq.s32.totalorder %s20, 0
      %p85 = por %p83, %p84
      %s86 = ssub.s32 %s21, %s33
      %p87 = scmp.eq.s32.totalorder %s86, 0
      %s89 = sadd.s32 %s88, 1
      %s90 = scalar_select %p87, %s88, %s89
      %p93 = pneg %p87
      %p94 = scmp.eq.s32.totalorder %s14, 5
      %p95 = por %p93, %p94
      %p96 = scmp.ne.s32.totalorder %s88, %s91
      %p97 = scmp.eq.s32.totalorder %s14, 0
      %p98 = por %p96, %p97
      %p99 = scmp.ne.s32.totalorder %s88, %s91
      %p100 = scmp.eq.s32.totalorder %s19, 5
      %p101 = por %p99, %p100
      %p102 = scmp.ne.s32.totalorder %s91, %s92
      %p103 = scmp.eq.s32.totalorder %s19, 0
      %p104 = por %p102, %p103
      %p105 = scmp.ne.s32.totalorder %s91, %s92
      %p106 = scmp.eq.s32.totalorder %s20, 5
      %p107 = por %p105, %p106
      %p109 = scmp.ne.s32.totalorder %s92, %s108
      %p110 = scmp.eq.s32.totalorder %s20, 0
      %p111 = por %p109, %p110
      %s112 = ssub.s32 %s22, %s29
      %p113 = scmp.eq.s32.totalorder %s112, 0
      %s115 = sadd.s32 %s114, 1
      %s116 = scalar_select %p113, %s114, %s115
      %p119 = pneg %p113
      %p120 = scmp.eq.s32.totalorder %s14, 5
      %p121 = por %p119, %p120
      %p122 = scmp.ne.s32.totalorder %s114, %s117
      %p123 = scmp.eq.s32.totalorder %s14, 0
      %p124 = por %p122, %p123
      %p125 = scmp.ne.s32.totalorder %s114, %s117
      %p126 = scmp.eq.s32.totalorder %s19, 5
      %p127 = por %p125, %p126
      %p128 = scmp.ne.s32.totalorder %s117, %s118
      %p129 = scmp.eq.s32.totalorder %s19, 0
      %p130 = por %p128, %p129
      %p131 = scmp.ne.s32.totalorder %s117, %s118
      %p132 = scmp.eq.s32.totalorder %s20, 5
      %p133 = por %p131, %p132
      %p135 = scmp.ne.s32.totalorder %s118, %s134
      %p136 = scmp.eq.s32.totalorder %s20, 0
      %p137 = por %p135, %p136
      %s138 = ssub.s32 %s22, %s29
      %p139 = scmp.eq.s32.totalorder %s138, 0
      %s141 = sadd.s32 %s140, 1
      %s142 = scalar_select %p139, %s140, %s141
      %p145 = pneg %p139
      %p146 = scmp.eq.s32.totalorder %s14, 5
      %p147 = por %p145, %p146
      %p148 = scmp.ne.s32.totalorder %s140, %s143
      %p149 = scmp.eq.s32.totalorder %s14, 0
      %p150 = por %p148, %p149
      %p151 = scmp.ne.s32.totalorder %s140, %s143
      %p152 = scmp.eq.s32.totalorder %s19, 5
      %p153 = por %p151, %p152
      %p154 = scmp.ne.s32.totalorder %s143, %s144
      %p155 = scmp.eq.s32.totalorder %s19, 0
      %p156 = por %p154, %p155
      %p157 = scmp.ne.s32.totalorder %s143, %s144
      %p158 = scmp.eq.s32.totalorder %s20, 5
      %p159 = por %p157, %p158
      %p161 = scmp.ne.s32.totalorder %s144, %s160
      %p162 = scmp.eq.s32.totalorder %s20, 0
      %p163 = por %p161, %p162
      %s164 = ssub.s32 %s21, %s33
      %p165 = scmp.eq.s32.totalorder %s164, 0
      %s167 = sadd.s32 %s166, 1
      %s168 = scalar_select %p165, %s166, %s167
      %p171 = pneg %p165
      %p172 = scmp.eq.s32.totalorder %s14, 5
      %p173 = por %p171, %p172
      %p174 = scmp.ne.s32.totalorder %s166, %s169
      %p175 = scmp.eq.s32.totalorder %s14, 0
      %p176 = por %p174, %p175
      %p177 = scmp.ne.s32.totalorder %s166, %s169
      %p178 = scmp.eq.s32.totalorder %s19, 5
      %p179 = por %p177, %p178
      %p180 = scmp.ne.s32.totalorder %s169, %s170
      %p181 = scmp.eq.s32.totalorder %s19, 0
      %p182 = por %p180, %p181
      %p183 = scmp.ne.s32.totalorder %s169, %s170
      %p184 = scmp.eq.s32.totalorder %s20, 5
      %p185 = por %p183, %p184
      %p187 = scmp.ne.s32.totalorder %s170, %s186
      %p188 = scmp.eq.s32.totalorder %s20, 0
      %p189 = por %p187, %p188
      %p190 = scmp.le.s32.totalorder 1, %s14
      %p191 = scmp.lt.s32.totalorder %s14, 7
      %p192 = pnand %p190, %p191
      %p193 = pneg %p192
      // Predicated region
      $region9: #{tpu_custom_call.1} parent=5 // pred_check
        _
      $region10: #{tpu_custom_call.1} parent=5 // pred_check_branch
        %195 = sbr.rel (%p192) target = $region12
      $region11: #{tpu_custom_call.1} parent=5 // pred_region
        %s196 = ssub.s32 %s14, 1
      $region12: #{tpu_custom_call.1} parent=5 // pred_fallthru
        _
      %p197 = scmp.lt.s32.totalorder %s14, 6
      // Predicated region
      $region13: #{tpu_custom_call.1} parent=5 // pred_check
        %p198 = pneg %p197
      $region14: #{tpu_custom_call.1} parent=5 // pred_check_branch
        %200 = sbr.rel (%p198) target = $region16
      $region15: #{tpu_custom_call.1} parent=5 // pred_region
        // Predicated region
        $region17: #{tpu_custom_call.1} parent=15 // pred_check
          %p201 = pneg %p46
        $region18: #{tpu_custom_call.1} parent=15 // pred_check_branch
          %203 = sbr.rel (%p201) target = $region20
        $region19: #{tpu_custom_call.1} parent=15 // pred_region
          %s204 = smul.u32 16, %s21
          %p205 = scmp.lt.s32.totalorder %s204, 31
          %s206 = scalar_select %p205, %s204, 31
          %s207 = smul.addr %s206, 8
          %s208 = scalar_lea.vmem %s0, %s207
          %s209 = smul.u32 16, %s21
        $region20: #{tpu_custom_call.1} parent=15 // pred_fallthru
          _
        // Predicated region
        $region21: #{tpu_custom_call.1} parent=15 // pred_check
          %p210 = pneg %p72
        $region22: #{tpu_custom_call.1} parent=15 // pred_check_branch
          %212 = sbr.rel (%p210) target = $region24
        $region23: #{tpu_custom_call.1} parent=15 // pred_region
          %s213 = sand.u32 %s62, 1
          %s214 = scalar_lea.sflag [#allocation6], %s213
          %s215 = sand.u32 %s62, 1
          %s216 = smul.addr %s215, 128
          %s217 = scalar_lea.vmem [#allocation5], %s216
          %s218 = smul.u32 16, %s22
          %s220 = ssub.s32 2048, 2048
          %221 = vsyncadd %s214, %s220
          %s222 = smul.addr %s218, 128
          %s223 = scalar_lea.hbm %s1, %s222
          %s224 = sshll.u32 %s217, 4
          %s225 = int_to_ptr.vmem [resolvable:$true] %s224
          %230 = dma.hbm_to_vmem [thread:$0]  %s223, 2048, %s225, %s214, 128, 128, 8
        $region24: #{tpu_custom_call.1} parent=15 // pred_fallthru
          _
        // Predicated region
        $region25: #{tpu_custom_call.1} parent=15 // pred_check
          %p231 = pneg %p98
        $region26: #{tpu_custom_call.1} parent=15 // pred_check_branch
          %233 = sbr.rel (%p231) target = $region28
        $region27: #{tpu_custom_call.1} parent=15 // pred_region
          %s234 = smul.u32 16, %s21
          %p235 = scmp.lt.s32.totalorder %s234, 31
          %s236 = scalar_select %p235, %s234, 31
          %s237 = smul.addr %s236, 8
          %s238 = scalar_lea.vmem %s2, %s237
          %s239 = smul.u32 16, %s21
        $region28: #{tpu_custom_call.1} parent=15 // pred_fallthru
          _
        // Predicated region
        $region29: #{tpu_custom_call.1} parent=15 // pred_check
          %p240 = pneg %p124
        $region30: #{tpu_custom_call.1} parent=15 // pred_check_branch
          %242 = sbr.rel (%p240) target = $region32
        $region31: #{tpu_custom_call.1} parent=15 // pred_region
          %p243 = scmp.lt.s32.totalorder %s22, 2
          %s244 = scalar_select %p243, %s22, 2
          %s245 = scalar_lea.vmem %s3, %s244
        $region32: #{tpu_custom_call.1} parent=15 // pred_fallthru
          _
        // Predicated region
        $region33: #{tpu_custom_call.1} parent=15 // pred_check
          %p246 = pneg %p150
        $region34: #{tpu_custom_call.1} parent=15 // pred_check_branch
          %248 = sbr.rel (%p246) target = $region36
        $region35: #{tpu_custom_call.1} parent=15 // pred_region
          %p249 = scmp.lt.s32.totalorder %s22, 2
          %s250 = scalar_select %p249, %s22, 2
          %s251 = scalar_lea.vmem %s4, %s250
        $region36: #{tpu_custom_call.1} parent=15 // pred_fallthru
          _
      $region16: #{tpu_custom_call.1} parent=5 // pred_fallthru
        _
      %p252 = scmp.le.s32.totalorder 1, %s14
      %p253 = scmp.lt.s32.totalorder %s14, 7
      %p254 = pnand %p252, %p253
      %p255 = pneg %p254
      // Predicated region
      $region37: #{tpu_custom_call.1} parent=5 // pred_check
        _
      $region38: #{tpu_custom_call.1} parent=5 // pred_check_branch
        %257 = sbr.rel (%p254) target = $region40
      $region39: #{tpu_custom_call.1} parent=5 // pred_region
        %s258 = ssub.s32 %s14, 1
        %s259 = sand.u32 %s65, 1
        %s260 = scalar_lea.sflag [#allocation6], %s259
        %s261 = sand.u32 %s65, 1
        %s262 = smul.addr %s261, 128
        %s263 = scalar_lea.vmem [#allocation5], %s262
        // Predicated region
        $region41: #{tpu_custom_call.1} parent=39 // pred_check
          %p264 = pneg %p78
        $region42: #{tpu_custom_call.1} parent=39 // pred_check_branch
          %266 = sbr.rel (%p264) target = $region44
        $region43: #{tpu_custom_call.1} parent=39 // pred_region
          %267 = dma.done %s260, 2048
        $region44: #{tpu_custom_call.1} parent=39 // pred_fallthru
          _
        %s268 = smul.u32 16, %s23
        %p269 = scmp.lt.s32.totalorder %s268, 31
        %s270 = scalar_select %p269, %s268, 31
        %s271 = smul.addr %s270, 8
        %s272 = scalar_lea.vmem %s0, %s271
        %p273 = pneg %p52
        %p274 = pneg %p49
        %s275 = sand.u32 %s65, 1
        %s276 = scalar_lea.sflag [#allocation6], %s275
        %s277 = sand.u32 %s65, 1
        %s278 = smul.addr %s277, 128
        %s279 = scalar_lea.vmem [#allocation5], %s278
        %p280 = pneg %p78
        %p281 = pneg %p75
        %s282 = smul.u32 16, %s23
        %p283 = scmp.lt.s32.totalorder %s282, 31
        %s284 = scalar_select %p283, %s282, 31
        %s285 = smul.addr %s284, 8
        %s286 = scalar_lea.vmem %s2, %s285
        %p287 = pneg %p104
        %p288 = pneg %p101
        %p289 = scmp.lt.s32.totalorder %s24, 2
        %s290 = scalar_select %p289, %s24, 2
        %s291 = scalar_lea.vmem %s3, %s290
        %p292 = pneg %p130
        %p293 = pneg %p127
        %p294 = scmp.lt.s32.totalorder %s24, 2
        %s295 = scalar_select %p294, %s24, 2
        %s296 = scalar_lea.vmem %s4, %s295
        %p297 = pneg %p156
        %p298 = pneg %p153
        %p299 = pneg %p182
        %p300 = pneg %p179
        %s301 = smul.u32 16, %s23
        %p302 = scmp.lt.s32.totalorder %s301, 31
        %s303 = scalar_select %p302, %s301, 31
        %s304 = smul.addr %s303, 8
        %s305 = scalar_lea.vmem %s5, %s304
        %s306 = smul.u32 16, %s23
        %p307 = scmp.lt.s32.totalorder %s306, 31
        %s308 = scalar_select %p307, %s306, 31
        %s309 = smul.addr %s308, 8
        %s310 = scalar_lea.vmem %s0, %s309
        %s311 = smul.u32 16, %s23
        %s312 = smul.u32 16, %s24
        %s313 = smul.u32 16, %s23
        %p314 = scmp.lt.s32.totalorder %s313, 31
        %s315 = scalar_select %p314, %s313, 31
        %s316 = smul.addr %s315, 8
        %s317 = scalar_lea.vmem %s2, %s316
        %s318 = smul.u32 16, %s23
        %p319 = scmp.lt.s32.totalorder %s24, 2
        %s320 = scalar_select %p319, %s24, 2
        %s321 = scalar_lea.vmem %s3, %s320
        %p322 = scmp.lt.s32.totalorder %s24, 2
        %s323 = scalar_select %p322, %s24, 2
        %s324 = scalar_lea.vmem %s4, %s323
        %s325 = smul.u32 16, %s23
        %p326 = scmp.lt.s32.totalorder %s325, 31
        %s327 = scalar_select %p326, %s325, 31
        %s328 = smul.addr %s327, 8
        %s329 = scalar_lea.vmem %s5, %s328
        %s330 = smul.u32 16, %s23
        %p331 = scmp.eq.s32.totalorder %s24, 0
        // Predicated region
        $region45: #{tpu_custom_call.1} parent=39 // pred_check
          %p332 = pneg %p331
        $region46: #{tpu_custom_call.1} parent=39 // pred_check_branch
          %334 = sbr.rel (%p332) target = $region48
        $region47: #{tpu_custom_call.1} parent=39 // pred_region
          %vm335 = vcmask 7168
          %336 = vst.msk [vmem:[#allocation2] sm:$0xff] %vm335, -inf
          %337 = vst.msk [vmem:[#allocation2 + $0x8] sm:$0xff] %vm335, -inf
          %338 = vst.msk [vmem:[#allocation2 + $0x10] sm:$0xff] %vm335, -inf
          %339 = vst.msk [vmem:[#allocation2 + $0x18] sm:$0xff] %vm335, -inf
          %340 = vst.msk [vmem:[#allocation2 + $0x20] sm:$0xff] %vm335, -inf
          %341 = vst.msk [vmem:[#allocation2 + $0x28] sm:$0xff] %vm335, -inf
          %342 = vst.msk [vmem:[#allocation2 + $0x30] sm:$0xff] %vm335, -inf
          %343 = vst.msk [vmem:[#allocation2 + $0x38] sm:$0xff] %vm335, -inf
          %344 = vst.msk [vmem:[#allocation2 + $0x40] sm:$0xff] %vm335, -inf
          %345 = vst.msk [vmem:[#allocation2 + $0x48] sm:$0xff] %vm335, -inf
          %346 = vst.msk [vmem:[#allocation2 + $0x50] sm:$0xff] %vm335, -inf
          %347 = vst.msk [vmem:[#allocation2 + $0x58] sm:$0xff] %vm335, -inf
          %348 = vst.msk [vmem:[#allocation2 + $0x60] sm:$0xff] %vm335, -inf
          %349 = vst.msk [vmem:[#allocation2 + $0x68] sm:$0xff] %vm335, -inf
          %350 = vst.msk [vmem:[#allocation2 + $0x70] sm:$0xff] %vm335, -inf
          %351 = vst.msk [vmem:[#allocation2 + $0x78] sm:$0xff] %vm335, -inf
          %352 = vst.msk [vmem:[#allocation3] sm:$0xff] %vm335, 0.0
          %353 = vst.msk [vmem:[#allocation3 + $0x8] sm:$0xff] %vm335, 0.0
          %354 = vst.msk [vmem:[#allocation3 + $0x10] sm:$0xff] %vm335, 0.0
          %355 = vst.msk [vmem:[#allocation3 + $0x18] sm:$0xff] %vm335, 0.0
          %356 = vst.msk [vmem:[#allocation3 + $0x20] sm:$0xff] %vm335, 0.0
          %357 = vst.msk [vmem:[#allocation3 + $0x28] sm:$0xff] %vm335, 0.0
          %358 = vst.msk [vmem:[#allocation3 + $0x30] sm:$0xff] %vm335, 0.0
          %359 = vst.msk [vmem:[#allocation3 + $0x38] sm:$0xff] %vm335, 0.0
          %360 = vst.msk [vmem:[#allocation3 + $0x40] sm:$0xff] %vm335, 0.0
          %361 = vst.msk [vmem:[#allocation3 + $0x48] sm:$0xff] %vm335, 0.0
          %362 = vst.msk [vmem:[#allocation3 + $0x50] sm:$0xff] %vm335, 0.0
          %363 = vst.msk [vmem:[#allocation3 + $0x58] sm:$0xff] %vm335, 0.0
          %364 = vst.msk [vmem:[#allocation3 + $0x60] sm:$0xff] %vm335, 0.0
          %365 = vst.msk [vmem:[#allocation3 + $0x68] sm:$0xff] %vm335, 0.0
          %366 = vst.msk [vmem:[#allocation3 + $0x70] sm:$0xff] %vm335, 0.0
          %367 = vst.msk [vmem:[#allocation3 + $0x78] sm:$0xff] %vm335, 0.0
          %368 = vst.msk [vmem:[#allocation4] sm:$0xff] %vm335, 0.0
          %369 = vst.msk [vmem:[#allocation4 + $0x8] sm:$0xff] %vm335, 0.0
          %370 = vst.msk [vmem:[#allocation4 + $0x10] sm:$0xff] %vm335, 0.0
          %371 = vst.msk [vmem:[#allocation4 + $0x18] sm:$0xff] %vm335, 0.0
          %372 = vst.msk [vmem:[#allocation4 + $0x20] sm:$0xff] %vm335, 0.0
          %373 = vst.msk [vmem:[#allocation4 + $0x28] sm:$0xff] %vm335, 0.0
          %374 = vst.msk [vmem:[#allocation4 + $0x30] sm:$0xff] %vm335, 0.0
          %375 = vst.msk [vmem:[#allocation4 + $0x38] sm:$0xff] %vm335, 0.0
          %376 = vst.msk [vmem:[#allocation4 + $0x40] sm:$0xff] %vm335, 0.0
          %377 = vst.msk [vmem:[#allocation4 + $0x48] sm:$0xff] %vm335, 0.0
          %378 = vst.msk [vmem:[#allocation4 + $0x50] sm:$0xff] %vm335, 0.0
          %379 = vst.msk [vmem:[#allocation4 + $0x58] sm:$0xff] %vm335, 0.0
          %380 = vst.msk [vmem:[#allocation4 + $0x60] sm:$0xff] %vm335, 0.0
          %381 = vst.msk [vmem:[#allocation4 + $0x68] sm:$0xff] %vm335, 0.0
          %382 = vst.msk [vmem:[#allocation4 + $0x70] sm:$0xff] %vm335, 0.0
          %383 = vst.msk [vmem:[#allocation4 + $0x78] sm:$0xff] %vm335, 0.0
        $region48: #{tpu_custom_call.1} parent=39 // pred_fallthru
          _
        %v384 = vld [vmem:[%s310] sm:$0xff]
        %v385 = vld [vmem:[%s310 + $0x8] sm:$0xff]
        %v386 = vld [vmem:[%s310 + $0x10] sm:$0xff]
        %v387 = vld [vmem:[%s310 + $0x18] sm:$0xff]
        %v388 = vld [vmem:[%s310 + $0x20] sm:$0xff]
        %v389 = vld [vmem:[%s310 + $0x28] sm:$0xff]
        %v390 = vld [vmem:[%s310 + $0x30] sm:$0xff]
        %v391 = vld [vmem:[%s310 + $0x38] sm:$0xff]
        %v392 = vld [vmem:[%s310 + $0x40] sm:$0xff]
        %v393 = vld [vmem:[%s310 + $0x48] sm:$0xff]
        %v394 = vld [vmem:[%s310 + $0x50] sm:$0xff]
        %v395 = vld [vmem:[%s310 + $0x58] sm:$0xff]
        %v396 = vld [vmem:[%s310 + $0x60] sm:$0xff]
        %v397 = vld [vmem:[%s310 + $0x68] sm:$0xff]
        %v398 = vld [vmem:[%s310 + $0x70] sm:$0xff]
        %v399 = vld [vmem:[%s310 + $0x78] sm:$0xff]
        %v400 = vld [vmem:[%s263] sm:$0xff]
        %v401 = vld [vmem:[%s263 + $0x8] sm:$0xff]
        %v402 = vld [vmem:[%s263 + $0x10] sm:$0xff]
        %v403 = vld [vmem:[%s263 + $0x18] sm:$0xff]
        %v404 = vld [vmem:[%s263 + $0x20] sm:$0xff]
        %v405 = vld [vmem:[%s263 + $0x28] sm:$0xff]
        %v406 = vld [vmem:[%s263 + $0x30] sm:$0xff]
        %v407 = vld [vmem:[%s263 + $0x38] sm:$0xff]
        %v408 = vld [vmem:[%s263 + $0x40] sm:$0xff]
        %v409 = vld [vmem:[%s263 + $0x48] sm:$0xff]
        %v410 = vld [vmem:[%s263 + $0x50] sm:$0xff]
        %v411 = vld [vmem:[%s263 + $0x58] sm:$0xff]
        %v412 = vld [vmem:[%s263 + $0x60] sm:$0xff]
        %v413 = vld [vmem:[%s263 + $0x68] sm:$0xff]
        %v414 = vld [vmem:[%s263 + $0x70] sm:$0xff]
        %v415 = vld [vmem:[%s263 + $0x78] sm:$0xff]
        %416 = vmatprep.subr.mxu0 0.0
        %417 = vmatpush1.xpose.msra.mxu0 %v415
        %418 = vmatprep.subr.mxu0 0.0
        %419 = vmatpush1.xpose.msra.mxu0 %v414
        %420 = vmatprep.subr.mxu0 0.0
        %421 = vmatpush1.xpose.msra.mxu0 %v413
        %422 = vmatprep.subr.mxu0 0.0
        %423 = vmatpush1.xpose.msra.mxu0 %v412
        %424 = vmatprep.subr.mxu0 0.0
        %425 = vmatpush1.xpose.msra.mxu0 %v411
        %426 = vmatprep.subr.mxu0 0.0
        %427 = vmatpush1.xpose.msra.mxu0 %v410
        %428 = vmatprep.subr.mxu0 0.0
        %429 = vmatpush1.xpose.msra.mxu0 %v409
        %430 = vmatprep.subr.mxu0 0.0
        %431 = vmatpush1.xpose.msra.mxu0 %v408
        %432 = vmatprep.subr.mxu0 0.0
        %433 = vmatpush1.xpose.msra.mxu0 %v407
        %434 = vmatprep.subr.mxu0 0.0
        %435 = vmatpush1.xpose.msra.mxu0 %v406
        %436 = vmatprep.subr.mxu0 0.0
        %437 = vmatpush1.xpose.msra.mxu0 %v405
        %438 = vmatprep.subr.mxu0 0.0
        %439 = vmatpush1.xpose.msra.mxu0 %v404
        %440 = vmatprep.subr.mxu0 0.0
        %441 = vmatpush1.xpose.msra.mxu0 %v403
        %442 = vmatprep.subr.mxu0 0.0
        %443 = vmatpush1.xpose.msra.mxu0 %v402
        %444 = vmatprep.subr.mxu0 0.0
        %445 = vmatpush1.xpose.msra.mxu0 %v401
        %446 = vmatprep.subr.mxu0 0.0
        %447 = vmatpush1.xpose.msra.mxu0 %v400
        %448 = vmatprep.subr.mxu0 0.0
        %449 = vmatpush2.xpose.msra.mxu0 0.0
        %450 = vmatprep.subr.mxu0 0.0
        %451 = vmatpush2.xpose.msra.mxu0 0.0
        %452 = vmatprep.subr.mxu0 0.0
        %453 = vmatpush2.xpose.msra.mxu0 0.0
        %454 = vmatprep.subr.mxu0 0.0
        %455 = vmatpush2.xpose.msra.mxu0 0.0
        %456 = vmatprep.subr.mxu0 0.0
        %457 = vmatpush2.xpose.msra.mxu0 0.0
        %458 = vmatprep.subr.mxu0 0.0
        %459 = vmatpush2.xpose.msra.mxu0 0.0
        %460 = vmatprep.subr.mxu0 0.0
        %461 = vmatpush2.xpose.msra.mxu0 0.0
        %462 = vmatprep.subr.mxu0 0.0
        %463 = vmatpush2.xpose.msra.mxu0 0.0
        %464 = vmatprep.subr.mxu0 0.0
        %465 = vmatpush2.xpose.msra.mxu0 0.0
        %466 = vmatprep.subr.mxu0 0.0
        %467 = vmatpush2.xpose.msra.mxu0 0.0
        %468 = vmatprep.subr.mxu0 0.0
        %469 = vmatpush2.xpose.msra.mxu0 0.0
        %470 = vmatprep.subr.mxu0 0.0
        %471 = vmatpush2.xpose.msra.mxu0 0.0
        %472 = vmatprep.subr.mxu0 0.0
        %473 = vmatpush2.xpose.msra.mxu0 0.0
        %474 = vmatprep.subr.mxu0 0.0
        %475 = vmatpush2.xpose.msra.mxu0 0.0
        %476 = vmatprep.subr.mxu0 0.0
        %477 = vmatpush2.xpose.msra.mxu0 0.0
        %478 = vmatprep.subr.mxu0 0.0
        %479 = vmatpush2.xpose.msra.mxu0 0.0
        %480 = vmatprep.mubr.f32.mxu0 0.0
        %481 = vmatmul.mubr.f32.gmra.mxu0 %v384
        %v482 = vpop.f32.mrf.mxu0
        %v483 = vadd.f32 0.0, %v482
        %v484 = vpop.f32.mrf.mxu0
        %485 = vmatprep.mubr.f32.mxu0 0.0
        %486 = vmatmul.mubr.f32.gmra.mxu0 %v385
        %v487 = vpop.f32.mrf.mxu0
        %v488 = vadd.f32 0.0, %v487
        %v489 = vpop.f32.mrf.mxu0
        %490 = vmatprep.mubr.f32.mxu0 0.0
        %491 = vmatmul.mubr.f32.gmra.mxu0 %v386
        %v492 = vpop.f32.mrf.mxu0
        %v493 = vadd.f32 0.0, %v492
        %v494 = vpop.f32.mrf.mxu0
        %495 = vmatprep.mubr.f32.mxu0 0.0
        %496 = vmatmul.mubr.f32.gmra.mxu0 %v387
        %v497 = vpop.f32.mrf.mxu0
        %v498 = vadd.f32 0.0, %v497
        %v499 = vpop.f32.mrf.mxu0
        %500 = vmatprep.mubr.f32.mxu0 0.0
        %501 = vmatmul.mubr.f32.gmra.mxu0 %v388
        %v502 = vpop.f32.mrf.mxu0
        %v503 = vadd.f32 0.0, %v502
        %v504 = vpop.f32.mrf.mxu0
        %505 = vmatprep.mubr.f32.mxu0 0.0
        %506 = vmatmul.mubr.f32.gmra.mxu0 %v389
        %v507 = vpop.f32.mrf.mxu0
        %v508 = vadd.f32 0.0, %v507
        %v509 = vpop.f32.mrf.mxu0
        %510 = vmatprep.mubr.f32.mxu0 0.0
        %511 = vmatmul.mubr.f32.gmra.mxu0 %v390
        %v512 = vpop.f32.mrf.mxu0
        %v513 = vadd.f32 0.0, %v512
        %v514 = vpop.f32.mrf.mxu0
        %515 = vmatprep.mubr.f32.mxu0 0.0
        %516 = vmatmul.mubr.f32.gmra.mxu0 %v391
        %v517 = vpop.f32.mrf.mxu0
        %v518 = vadd.f32 0.0, %v517
        %v519 = vpop.f32.mrf.mxu0
        %520 = vmatprep.mubr.f32.mxu0 0.0
        %521 = vmatmul.mubr.f32.gmra.mxu0 %v392
        %v522 = vpop.f32.mrf.mxu0
        %v523 = vadd.f32 0.0, %v522
        %v524 = vpop.f32.mrf.mxu0
        %525 = vmatprep.mubr.f32.mxu0 0.0
        %526 = vmatmul.mubr.f32.gmra.mxu0 %v393
        %v527 = vpop.f32.mrf.mxu0
        %v528 = vadd.f32 0.0, %v527
        %v529 = vpop.f32.mrf.mxu0
        %530 = vmatprep.mubr.f32.mxu0 0.0
        %531 = vmatmul.mubr.f32.gmra.mxu0 %v394
        %v532 = vpop.f32.mrf.mxu0
        %v533 = vadd.f32 0.0, %v532
        %v534 = vpop.f32.mrf.mxu0
        %535 = vmatprep.mubr.f32.mxu0 0.0
        %536 = vmatmul.mubr.f32.gmra.mxu0 %v395
        %v537 = vpop.f32.mrf.mxu0
        %v538 = vadd.f32 0.0, %v537
        %v539 = vpop.f32.mrf.mxu0
        %540 = vmatprep.mubr.f32.mxu0 0.0
        %541 = vmatmul.mubr.f32.gmra.mxu0 %v396
        %v542 = vpop.f32.mrf.mxu0
        %v543 = vadd.f32 0.0, %v542
        %v544 = vpop.f32.mrf.mxu0
        %545 = vmatprep.mubr.f32.mxu0 0.0
        %546 = vmatmul.mubr.f32.gmra.mxu0 %v397
        %v547 = vpop.f32.mrf.mxu0
        %v548 = vadd.f32 0.0, %v547
        %v549 = vpop.f32.mrf.mxu0
        %550 = vmatprep.mubr.f32.mxu0 0.0
        %551 = vmatmul.mubr.f32.gmra.mxu0 %v398
        %v552 = vpop.f32.mrf.mxu0
        %v553 = vadd.f32 0.0, %v552
        %v554 = vpop.f32.mrf.mxu0
        %555 = vmatprep.mubr.f32.mxu0 0.0
        %556 = vmatmul.mubr.f32.gmra.mxu0 %v399
        %v557 = vpop.f32.mrf.mxu0
        %v558 = vadd.f32 0.0, %v557
        %v559 = vpop.f32.mrf.mxu0
        %560 = vdwg.mxu0
        %v561 = vld [vmem:[%s317] sm:$0xff]
        %v562 = vld [vmem:[%s317 + $0x8] sm:$0xff]
        %v563 = vld [vmem:[%s317 + $0x10] sm:$0xff]
        %v564 = vld [vmem:[%s317 + $0x18] sm:$0xff]
        %v565 = vld [vmem:[%s317 + $0x20] sm:$0xff]
        %v566 = vld [vmem:[%s317 + $0x28] sm:$0xff]
        %v567 = vld [vmem:[%s317 + $0x30] sm:$0xff]
        %v568 = vld [vmem:[%s317 + $0x38] sm:$0xff]
        %v569 = vld [vmem:[%s317 + $0x40] sm:$0xff]
        %v570 = vld [vmem:[%s317 + $0x48] sm:$0xff]
        %v571 = vld [vmem:[%s317 + $0x50] sm:$0xff]
        %v572 = vld [vmem:[%s317 + $0x58] sm:$0xff]
        %v573 = vld [vmem:[%s317 + $0x60] sm:$0xff]
        %v574 = vld [vmem:[%s317 + $0x68] sm:$0xff]
        %v575 = vld [vmem:[%s317 + $0x70] sm:$0xff]
        %v576 = vld [vmem:[%s317 + $0x78] sm:$0xff]
        %v577 = vmul.f32 %v561, 20.0
        %v578 = vmul.f32 %v562, 20.0
        %v579 = vmul.f32 %v563, 20.0
        %v580 = vmul.f32 %v564, 20.0
        %v581 = vmul.f32 %v565, 20.0
        %v582 = vmul.f32 %v566, 20.0
        %v583 = vmul.f32 %v567, 20.0
        %v584 = vmul.f32 %v568, 20.0
        %v585 = vmul.f32 %v569, 20.0
        %v586 = vmul.f32 %v570, 20.0
        %v587 = vmul.f32 %v571, 20.0
        %v588 = vmul.f32 %v572, 20.0
        %v589 = vmul.f32 %v573, 20.0
        %v590 = vmul.f32 %v574, 20.0
        %v591 = vmul.f32 %v575, 20.0
        %v592 = vmul.f32 %v576, 20.0
        %594 = vset.pattern.permute.xlu0 0
        %595 = vperm.xlu0 %594, %v577
        %v596 = vpop.permute.xlu0 %595
        %599 = vset.pattern.permute.xlu0 0
        %600 = vperm.xlu0 %599, %v578
        %v601 = vpop.permute.xlu0 %600
        %604 = vset.pattern.permute.xlu0 0
        %605 = vperm.xlu0 %604, %v579
        %v606 = vpop.permute.xlu0 %605
        %609 = vset.pattern.permute.xlu0 0
        %610 = vperm.xlu0 %609, %v580
        %v611 = vpop.permute.xlu0 %610
        %614 = vset.pattern.permute.xlu0 0
        %615 = vperm.xlu0 %614, %v581
        %v616 = vpop.permute.xlu0 %615
        %619 = vset.pattern.permute.xlu0 0
        %620 = vperm.xlu0 %619, %v582
        %v621 = vpop.permute.xlu0 %620
        %624 = vset.pattern.permute.xlu0 0
        %625 = vperm.xlu0 %624, %v583
        %v626 = vpop.permute.xlu0 %625
        %629 = vset.pattern.permute.xlu0 0
        %630 = vperm.xlu0 %629, %v584
        %v631 = vpop.permute.xlu0 %630
        %634 = vset.pattern.permute.xlu0 0
        %635 = vperm.xlu0 %634, %v585
        %v636 = vpop.permute.xlu0 %635
        %639 = vset.pattern.permute.xlu0 0
        %640 = vperm.xlu0 %639, %v586
        %v641 = vpop.permute.xlu0 %640
        %644 = vset.pattern.permute.xlu0 0
        %645 = vperm.xlu0 %644, %v587
        %v646 = vpop.permute.xlu0 %645
        %649 = vset.pattern.permute.xlu0 0
        %650 = vperm.xlu0 %649, %v588
        %v651 = vpop.permute.xlu0 %650
        %654 = vset.pattern.permute.xlu0 0
        %655 = vperm.xlu0 %654, %v589
        %v656 = vpop.permute.xlu0 %655
        %659 = vset.pattern.permute.xlu0 0
        %660 = vperm.xlu0 %659, %v590
        %v661 = vpop.permute.xlu0 %660
        %664 = vset.pattern.permute.xlu0 0
        %665 = vperm.xlu0 %664, %v591
        %v666 = vpop.permute.xlu0 %665
        %669 = vset.pattern.permute.xlu0 0
        %670 = vperm.xlu0 %669, %v592
        %v671 = vpop.permute.xlu0 %670
        %v673 = vmul.f32 %v483, %v596
        %v674 = vmul.f32 %v488, %v601
        %v675 = vmul.f32 %v493, %v606
        %v676 = vmul.f32 %v498, %v611
        %v677 = vmul.f32 %v503, %v616
        %v678 = vmul.f32 %v508, %v621
        %v679 = vmul.f32 %v513, %v626
        %v680 = vmul.f32 %v518, %v631
        %v681 = vmul.f32 %v523, %v636
        %v682 = vmul.f32 %v528, %v641
        %v683 = vmul.f32 %v533, %v646
        %v684 = vmul.f32 %v538, %v651
        %v685 = vmul.f32 %v543, %v656
        %v686 = vmul.f32 %v548, %v661
        %v687 = vmul.f32 %v553, %v666
        %v688 = vmul.f32 %v558, %v671
        %v689 = vld [vmem:[%s321] sm:$0x1]
        %v691 = vlaneseq
        %v692 = vshrl.u32 %v691, 7
        %v693 = vsub.s32 0, %v692
        %v694 = vrot.slane %v689, %v693
        %v696 = vmul.f32 %v673, %v694
        %v697 = vmul.f32 %v674, %v694
        %v698 = vmul.f32 %v675, %v694
        %v699 = vmul.f32 %v676, %v694
        %v700 = vmul.f32 %v677, %v694
        %v701 = vmul.f32 %v678, %v694
        %v702 = vmul.f32 %v679, %v694
        %v703 = vmul.f32 %v680, %v694
        %v704 = vmul.f32 %v681, %v694
        %v705 = vmul.f32 %v682, %v694
        %v706 = vmul.f32 %v683, %v694
        %v707 = vmul.f32 %v684, %v694
        %v708 = vmul.f32 %v685, %v694
        %v709 = vmul.f32 %v686, %v694
        %v710 = vmul.f32 %v687, %v694
        %v711 = vmul.f32 %v688, %v694
        %v712 = vld [vmem:[%s324] sm:$0x1]
        %v714 = vlaneseq
        %v715 = vshrl.u32 %v714, 7
        %v716 = vsub.s32 0, %v715
        %v717 = vrot.slane %v712, %v716
        %v719 = vadd.f32 %v696, %v717
        %v720 = vadd.f32 %v697, %v717
        %v721 = vadd.f32 %v698, %v717
        %v722 = vadd.f32 %v699, %v717
        %v723 = vadd.f32 %v700, %v717
        %v724 = vadd.f32 %v701, %v717
        %v725 = vadd.f32 %v702, %v717
        %v726 = vadd.f32 %v703, %v717
        %v727 = vadd.f32 %v704, %v717
        %v728 = vadd.f32 %v705, %v717
        %v729 = vadd.f32 %v706, %v717
        %v730 = vadd.f32 %v707, %v717
        %v731 = vadd.f32 %v708, %v717
        %v732 = vadd.f32 %v709, %v717
        %v733 = vadd.f32 %v710, %v717
        %v734 = vadd.f32 %v711, %v717
        %v735 = vld [vmem:[#allocation2] sm:$0xff]
        %v736 = vld [vmem:[#allocation2 + $0x8] sm:$0xff]
        %v737 = vld [vmem:[#allocation2 + $0x10] sm:$0xff]
        %v738 = vld [vmem:[#allocation2 + $0x18] sm:$0xff]
        %v739 = vld [vmem:[#allocation2 + $0x20] sm:$0xff]
        %v740 = vld [vmem:[#allocation2 + $0x28] sm:$0xff]
        %v741 = vld [vmem:[#allocation2 + $0x30] sm:$0xff]
        %v742 = vld [vmem:[#allocation2 + $0x38] sm:$0xff]
        %v743 = vld [vmem:[#allocation2 + $0x40] sm:$0xff]
        %v744 = vld [vmem:[#allocation2 + $0x48] sm:$0xff]
        %v745 = vld [vmem:[#allocation2 + $0x50] sm:$0xff]
        %v746 = vld [vmem:[#allocation2 + $0x58] sm:$0xff]
        %v747 = vld [vmem:[#allocation2 + $0x60] sm:$0xff]
        %v748 = vld [vmem:[#allocation2 + $0x68] sm:$0xff]
        %v749 = vld [vmem:[#allocation2 + $0x70] sm:$0xff]
        %v750 = vld [vmem:[#allocation2 + $0x78] sm:$0xff]
        %751 = vmax.xlane.f32.xlu0 %v719
        %v752 = vpop.xlane.xlu0 %751
        %753 = vmax.xlane.f32.xlu0 %v720
        %v754 = vpop.xlane.xlu0 %753
        %755 = vmax.xlane.f32.xlu0 %v721
        %v756 = vpop.xlane.xlu0 %755
        %757 = vmax.xlane.f32.xlu0 %v722
        %v758 = vpop.xlane.xlu0 %757
        %759 = vmax.xlane.f32.xlu0 %v723
        %v760 = vpop.xlane.xlu0 %759
        %761 = vmax.xlane.f32.xlu0 %v724
        %v762 = vpop.xlane.xlu0 %761
        %763 = vmax.xlane.f32.xlu0 %v725
        %v764 = vpop.xlane.xlu0 %763
        %765 = vmax.xlane.f32.xlu0 %v726
        %v766 = vpop.xlane.xlu0 %765
        %767 = vmax.xlane.f32.xlu0 %v727
        %v768 = vpop.xlane.xlu0 %767
        %769 = vmax.xlane.f32.xlu0 %v728
        %v770 = vpop.xlane.xlu0 %769
        %771 = vmax.xlane.f32.xlu0 %v729
        %v772 = vpop.xlane.xlu0 %771
        %773 = vmax.xlane.f32.xlu0 %v730
        %v774 = vpop.xlane.xlu0 %773
        %775 = vmax.xlane.f32.xlu0 %v731
        %v776 = vpop.xlane.xlu0 %775
        %777 = vmax.xlane.f32.xlu0 %v732
        %v778 = vpop.xlane.xlu0 %777
        %779 = vmax.xlane.f32.xlu0 %v733
        %v780 = vpop.xlane.xlu0 %779
        %781 = vmax.xlane.f32.xlu0 %v734
        %v782 = vpop.xlane.xlu0 %781
        %v783 = vmax.f32 %v735, %v752
        %v784 = vmax.f32 %v736, %v754
        %v785 = vmax.f32 %v737, %v756
        %v786 = vmax.f32 %v738, %v758
        %v787 = vmax.f32 %v739, %v760
        %v788 = vmax.f32 %v740, %v762
        %v789 = vmax.f32 %v741, %v764
        %v790 = vmax.f32 %v742, %v766
        %v791 = vmax.f32 %v743, %v768
        %v792 = vmax.f32 %v744, %v770
        %v793 = vmax.f32 %v745, %v772
        %v794 = vmax.f32 %v746, %v774
        %v795 = vmax.f32 %v747, %v776
        %v796 = vmax.f32 %v748, %v778
        %v797 = vmax.f32 %v749, %v780
        %v798 = vmax.f32 %v750, %v782
        %v799 = vsub.f32 %v735, %v783
        %v800 = vsub.f32 %v736, %v784
        %v801 = vsub.f32 %v737, %v785
        %v802 = vsub.f32 %v738, %v786
        %v803 = vsub.f32 %v739, %v787
        %v804 = vsub.f32 %v740, %v788
        %v805 = vsub.f32 %v741, %v789
        %v806 = vsub.f32 %v742, %v790
        %v807 = vsub.f32 %v743, %v791
        %v808 = vsub.f32 %v744, %v792
        %v809 = vsub.f32 %v745, %v793
        %v810 = vsub.f32 %v746, %v794
        %v811 = vsub.f32 %v747, %v795
        %v812 = vsub.f32 %v748, %v796
        %v813 = vsub.f32 %v749, %v797
        %v814 = vsub.f32 %v750, %v798
        %v815 = vmul.f32 %v799, 1.442695
        %v816 = vpow.pop %v815
        %v817 = vmul.f32 %v800, 1.442695
        %v818 = vpow.pop %v817
        %v819 = vmul.f32 %v801, 1.442695
        %v820 = vpow.pop %v819
        %v821 = vmul.f32 %v802, 1.442695
        %v822 = vpow.pop %v821
        %v823 = vmul.f32 %v803, 1.442695
        %v824 = vpow.pop %v823
        %v825 = vmul.f32 %v804, 1.442695
        %v826 = vpow.pop %v825
        %v827 = vmul.f32 %v805, 1.442695
        %v828 = vpow.pop %v827
        %v829 = vmul.f32 %v806, 1.442695
        %v830 = vpow.pop %v829
        %v831 = vmul.f32 %v807, 1.442695
        %v832 = vpow.pop %v831
        %v833 = vmul.f32 %v808, 1.442695
        %v834 = vpow.pop %v833
        %v835 = vmul.f32 %v809, 1.442695
        %v836 = vpow.pop %v835
        %v837 = vmul.f32 %v810, 1.442695
        %v838 = vpow.pop %v837
        %v839 = vmul.f32 %v811, 1.442695
        %v840 = vpow.pop %v839
        %v841 = vmul.f32 %v812, 1.442695
        %v842 = vpow.pop %v841
        %v843 = vmul.f32 %v813, 1.442695
        %v844 = vpow.pop %v843
        %v845 = vmul.f32 %v814, 1.442695
        %v846 = vpow.pop %v845
        %v847 = vld [vmem:[#allocation3] sm:$0xff]
        %v848 = vld [vmem:[#allocation3 + $0x8] sm:$0xff]
        %v849 = vld [vmem:[#allocation3 + $0x10] sm:$0xff]
        %v850 = vld [vmem:[#allocation3 + $0x18] sm:$0xff]
        %v851 = vld [vmem:[#allocation3 + $0x20] sm:$0xff]
        %v852 = vld [vmem:[#allocation3 + $0x28] sm:$0xff]
        %v853 = vld [vmem:[#allocation3 + $0x30] sm:$0xff]
        %v854 = vld [vmem:[#allocation3 + $0x38] sm:$0xff]
        %v855 = vld [vmem:[#allocation3 + $0x40] sm:$0xff]
        %v856 = vld [vmem:[#allocation3 + $0x48] sm:$0xff]
        %v857 = vld [vmem:[#allocation3 + $0x50] sm:$0xff]
        %v858 = vld [vmem:[#allocation3 + $0x58] sm:$0xff]
        %v859 = vld [vmem:[#allocation3 + $0x60] sm:$0xff]
        %v860 = vld [vmem:[#allocation3 + $0x68] sm:$0xff]
        %v861 = vld [vmem:[#allocation3 + $0x70] sm:$0xff]
        %v862 = vld [vmem:[#allocation3 + $0x78] sm:$0xff]
        %v863 = vmul.f32 %v816, %v847
        %v864 = vmul.f32 %v818, %v848
        %v865 = vmul.f32 %v820, %v849
        %v866 = vmul.f32 %v822, %v850
        %v867 = vmul.f32 %v824, %v851
        %v868 = vmul.f32 %v826, %v852
        %v869 = vmul.f32 %v828, %v853
        %v870 = vmul.f32 %v830, %v854
        %v871 = vmul.f32 %v832, %v855
        %v872 = vmul.f32 %v834, %v856
        %v873 = vmul.f32 %v836, %v857
        %v874 = vmul.f32 %v838, %v858
        %v875 = vmul.f32 %v840, %v859
        %v876 = vmul.f32 %v842, %v860
        %v877 = vmul.f32 %v844, %v861
        %v878 = vmul.f32 %v846, %v862
        %880 = vset.pattern.permute.xlu0 0
        %881 = vperm.xlu0 %880, %v783
        %v882 = vpop.permute.xlu0 %881
        %885 = vset.pattern.permute.xlu0 0
        %886 = vperm.xlu0 %885, %v784
        %v887 = vpop.permute.xlu0 %886
        %890 = vset.pattern.permute.xlu0 0
        %891 = vperm.xlu0 %890, %v785
        %v892 = vpop.permute.xlu0 %891
        %895 = vset.pattern.permute.xlu0 0
        %896 = vperm.xlu0 %895, %v786
        %v897 = vpop.permute.xlu0 %896
        %900 = vset.pattern.permute.xlu0 0
        %901 = vperm.xlu0 %900, %v787
        %v902 = vpop.permute.xlu0 %901
        %905 = vset.pattern.permute.xlu0 0
        %906 = vperm.xlu0 %905, %v788
        %v907 = vpop.permute.xlu0 %906
        %910 = vset.pattern.permute.xlu0 0
        %911 = vperm.xlu0 %910, %v789
        %v912 = vpop.permute.xlu0 %911
        %915 = vset.pattern.permute.xlu0 0
        %916 = vperm.xlu0 %915, %v790
        %v917 = vpop.permute.xlu0 %916
        %920 = vset.pattern.permute.xlu0 0
        %921 = vperm.xlu0 %920, %v791
        %v922 = vpop.permute.xlu0 %921
        %925 = vset.pattern.permute.xlu0 0
        %926 = vperm.xlu0 %925, %v792
        %v927 = vpop.permute.xlu0 %926
        %930 = vset.pattern.permute.xlu0 0
        %931 = vperm.xlu0 %930, %v793
        %v932 = vpop.permute.xlu0 %931
        %935 = vset.pattern.permute.xlu0 0
        %936 = vperm.xlu0 %935, %v794
        %v937 = vpop.permute.xlu0 %936
        %940 = vset.pattern.permute.xlu0 0
        %941 = vperm.xlu0 %940, %v795
        %v942 = vpop.permute.xlu0 %941
        %945 = vset.pattern.permute.xlu0 0
        %946 = vperm.xlu0 %945, %v796
        %v947 = vpop.permute.xlu0 %946
        %950 = vset.pattern.permute.xlu0 0
        %951 = vperm.xlu0 %950, %v797
        %v952 = vpop.permute.xlu0 %951
        %955 = vset.pattern.permute.xlu0 0
        %956 = vperm.xlu0 %955, %v798
        %v957 = vpop.permute.xlu0 %956
        %v959 = vsub.f32 %v719, %v882
        %v960 = vsub.f32 %v720, %v887
        %v961 = vsub.f32 %v721, %v892
        %v962 = vsub.f32 %v722, %v897
        %v963 = vsub.f32 %v723, %v902
        %v964 = vsub.f32 %v724, %v907
        %v965 = vsub.f32 %v725, %v912
        %v966 = vsub.f32 %v726, %v917
        %v967 = vsub.f32 %v727, %v922
        %v968 = vsub.f32 %v728, %v927
        %v969 = vsub.f32 %v729, %v932
        %v970 = vsub.f32 %v730, %v937
        %v971 = vsub.f32 %v731, %v942
        %v972 = vsub.f32 %v732, %v947
        %v973 = vsub.f32 %v733, %v952
        %v974 = vsub.f32 %v734, %v957
        %v975 = vmul.f32 %v959, 1.442695
        %v976 = vpow.pop %v975
        %v977 = vmul.f32 %v960, 1.442695
        %v978 = vpow.pop %v977
        %v979 = vmul.f32 %v961, 1.442695
        %v980 = vpow.pop %v979
        %v981 = vmul.f32 %v962, 1.442695
        %v982 = vpow.pop %v981
        %v983 = vmul.f32 %v963, 1.442695
        %v984 = vpow.pop %v983
        %v985 = vmul.f32 %v964, 1.442695
        %v986 = vpow.pop %v985
        %v987 = vmul.f32 %v965, 1.442695
        %v988 = vpow.pop %v987
        %v989 = vmul.f32 %v966, 1.442695
        %v990 = vpow.pop %v989
        %v991 = vmul.f32 %v967, 1.442695
        %v992 = vpow.pop %v991
        %v993 = vmul.f32 %v968, 1.442695
        %v994 = vpow.pop %v993
        %v995 = vmul.f32 %v969, 1.442695
        %v996 = vpow.pop %v995
        %v997 = vmul.f32 %v970, 1.442695
        %v998 = vpow.pop %v997
        %v999 = vmul.f32 %v971, 1.442695
        %v1000 = vpow.pop %v999
        %v1001 = vmul.f32 %v972, 1.442695
        %v1002 = vpow.pop %v1001
        %v1003 = vmul.f32 %v973, 1.442695
        %v1004 = vpow.pop %v1003
        %v1005 = vmul.f32 %v974, 1.442695
        %v1006 = vpow.pop %v1005
        %1007 = vadd.xlane.f32.xlu0 %v976
        %v1008 = vpop.xlane.xlu0 %1007
        %1009 = vadd.xlane.f32.xlu0 %v978
        %v1010 = vpop.xlane.xlu0 %1009
        %1011 = vadd.xlane.f32.xlu0 %v980
        %v1012 = vpop.xlane.xlu0 %1011
        %1013 = vadd.xlane.f32.xlu0 %v982
        %v1014 = vpop.xlane.xlu0 %1013
        %1015 = vadd.xlane.f32.xlu0 %v984
        %v1016 = vpop.xlane.xlu0 %1015
        %1017 = vadd.xlane.f32.xlu0 %v986
        %v1018 = vpop.xlane.xlu0 %1017
        %1019 = vadd.xlane.f32.xlu0 %v988
        %v1020 = vpop.xlane.xlu0 %1019
        %1021 = vadd.xlane.f32.xlu0 %v990
        %v1022 = vpop.xlane.xlu0 %1021
        %1023 = vadd.xlane.f32.xlu0 %v992
        %v1024 = vpop.xlane.xlu0 %1023
        %1025 = vadd.xlane.f32.xlu0 %v994
        %v1026 = vpop.xlane.xlu0 %1025
        %1027 = vadd.xlane.f32.xlu0 %v996
        %v1028 = vpop.xlane.xlu0 %1027
        %1029 = vadd.xlane.f32.xlu0 %v998
        %v1030 = vpop.xlane.xlu0 %1029
        %1031 = vadd.xlane.f32.xlu0 %v1000
        %v1032 = vpop.xlane.xlu0 %1031
        %1033 = vadd.xlane.f32.xlu0 %v1002
        %v1034 = vpop.xlane.xlu0 %1033
        %1035 = vadd.xlane.f32.xlu0 %v1004
        %v1036 = vpop.xlane.xlu0 %1035
        %1037 = vadd.xlane.f32.xlu0 %v1006
        %v1038 = vpop.xlane.xlu0 %1037
        %v1039 = vadd.f32 %v863, %v1008
        %v1040 = vadd.f32 %v864, %v1010
        %v1041 = vadd.f32 %v865, %v1012
        %v1042 = vadd.f32 %v866, %v1014
        %v1043 = vadd.f32 %v867, %v1016
        %v1044 = vadd.f32 %v868, %v1018
        %v1045 = vadd.f32 %v869, %v1020
        %v1046 = vadd.f32 %v870, %v1022
        %v1047 = vadd.f32 %v871, %v1024
        %v1048 = vadd.f32 %v872, %v1026
        %v1049 = vadd.f32 %v873, %v1028
        %v1050 = vadd.f32 %v874, %v1030
        %v1051 = vadd.f32 %v875, %v1032
        %v1052 = vadd.f32 %v876, %v1034
        %v1053 = vadd.f32 %v877, %v1036
        %v1054 = vadd.f32 %v878, %v1038
        %vm1055 = vcmask 7168
        %1056 = vst.msk [vmem:[#allocation3] sm:$0xff] %vm1055, %v1039
        %1057 = vst.msk [vmem:[#allocation3 + $0x8] sm:$0xff] %vm1055, %v1040
        %1058 = vst.msk [vmem:[#allocation3 + $0x10] sm:$0xff] %vm1055, %v1041
        %1059 = vst.msk [vmem:[#allocation3 + $0x18] sm:$0xff] %vm1055, %v1042
        %1060 = vst.msk [vmem:[#allocation3 + $0x20] sm:$0xff] %vm1055, %v1043
        %1061 = vst.msk [vmem:[#allocation3 + $0x28] sm:$0xff] %vm1055, %v1044
        %1062 = vst.msk [vmem:[#allocation3 + $0x30] sm:$0xff] %vm1055, %v1045
        %1063 = vst.msk [vmem:[#allocation3 + $0x38] sm:$0xff] %vm1055, %v1046
        %1064 = vst.msk [vmem:[#allocation3 + $0x40] sm:$0xff] %vm1055, %v1047
        %1065 = vst.msk [vmem:[#allocation3 + $0x48] sm:$0xff] %vm1055, %v1048
        %1066 = vst.msk [vmem:[#allocation3 + $0x50] sm:$0xff] %vm1055, %v1049
        %1067 = vst.msk [vmem:[#allocation3 + $0x58] sm:$0xff] %vm1055, %v1050
        %1068 = vst.msk [vmem:[#allocation3 + $0x60] sm:$0xff] %vm1055, %v1051
        %1069 = vst.msk [vmem:[#allocation3 + $0x68] sm:$0xff] %vm1055, %v1052
        %1070 = vst.msk [vmem:[#allocation3 + $0x70] sm:$0xff] %vm1055, %v1053
        %1071 = vst.msk [vmem:[#allocation3 + $0x78] sm:$0xff] %vm1055, %v1054
        %1072 = vst.msk [vmem:[#allocation2] sm:$0xff] %vm1055, %v783
        %1073 = vst.msk [vmem:[#allocation2 + $0x8] sm:$0xff] %vm1055, %v784
        %1074 = vst.msk [vmem:[#allocation2 + $0x10] sm:$0xff] %vm1055, %v785
        %1075 = vst.msk [vmem:[#allocation2 + $0x18] sm:$0xff] %vm1055, %v786
        %1076 = vst.msk [vmem:[#allocation2 + $0x20] sm:$0xff] %vm1055, %v787
        %1077 = vst.msk [vmem:[#allocation2 + $0x28] sm:$0xff] %vm1055, %v788
        %1078 = vst.msk [vmem:[#allocation2 + $0x30] sm:$0xff] %vm1055, %v789
        %1079 = vst.msk [vmem:[#allocation2 + $0x38] sm:$0xff] %vm1055, %v790
        %1080 = vst.msk [vmem:[#allocation2 + $0x40] sm:$0xff] %vm1055, %v791
        %1081 = vst.msk [vmem:[#allocation2 + $0x48] sm:$0xff] %vm1055, %v792
        %1082 = vst.msk [vmem:[#allocation2 + $0x50] sm:$0xff] %vm1055, %v793
        %1083 = vst.msk [vmem:[#allocation2 + $0x58] sm:$0xff] %vm1055, %v794
        %1084 = vst.msk [vmem:[#allocation2 + $0x60] sm:$0xff] %vm1055, %v795
        %1085 = vst.msk [vmem:[#allocation2 + $0x68] sm:$0xff] %vm1055, %v796
        %1086 = vst.msk [vmem:[#allocation2 + $0x70] sm:$0xff] %vm1055, %v797
        %1087 = vst.msk [vmem:[#allocation2 + $0x78] sm:$0xff] %vm1055, %v798
        %p1088 = scmp.eq.s32.totalorder %s24, %s23
        // Predicated region
        $region49: #{tpu_custom_call.1} parent=39 // pred_check
          %p1089 = pneg %p1088
        $region50: #{tpu_custom_call.1} parent=39 // pred_check_branch
          %1091 = sbr.rel (%p1089) target = $region52
        $region51: #{tpu_custom_call.1} parent=39 // pred_region
          %v1092 = vmul.f32 %v384, %v400
          %v1093 = vmul.f32 %v385, %v401
          %v1094 = vmul.f32 %v386, %v402
          %v1095 = vmul.f32 %v387, %v403
          %v1096 = vmul.f32 %v388, %v404
          %v1097 = vmul.f32 %v389, %v405
          %v1098 = vmul.f32 %v390, %v406
          %v1099 = vmul.f32 %v391, %v407
          %v1100 = vmul.f32 %v392, %v408
          %v1101 = vmul.f32 %v393, %v409
          %v1102 = vmul.f32 %v394, %v410
          %v1103 = vmul.f32 %v395, %v411
          %v1104 = vmul.f32 %v396, %v412
          %v1105 = vmul.f32 %v397, %v413
          %v1106 = vmul.f32 %v398, %v414
          %v1107 = vmul.f32 %v399, %v415
          %1108 = vadd.xlane.f32.xlu0 %v1092
          %v1109 = vpop.xlane.xlu0 %1108
          %1110 = vadd.xlane.f32.xlu0 %v1093
          %v1111 = vpop.xlane.xlu0 %1110
          %1112 = vadd.xlane.f32.xlu0 %v1094
          %v1113 = vpop.xlane.xlu0 %1112
          %1114 = vadd.xlane.f32.xlu0 %v1095
          %v1115 = vpop.xlane.xlu0 %1114
          %1116 = vadd.xlane.f32.xlu0 %v1096
          %v1117 = vpop.xlane.xlu0 %1116
          %1118 = vadd.xlane.f32.xlu0 %v1097
          %v1119 = vpop.xlane.xlu0 %1118
          %1120 = vadd.xlane.f32.xlu0 %v1098
          %v1121 = vpop.xlane.xlu0 %1120
          %1122 = vadd.xlane.f32.xlu0 %v1099
          %v1123 = vpop.xlane.xlu0 %1122
          %1124 = vadd.xlane.f32.xlu0 %v1100
          %v1125 = vpop.xlane.xlu0 %1124
          %1126 = vadd.xlane.f32.xlu0 %v1101
          %v1127 = vpop.xlane.xlu0 %1126
          %1128 = vadd.xlane.f32.xlu0 %v1102
          %v1129 = vpop.xlane.xlu0 %1128
          %1130 = vadd.xlane.f32.xlu0 %v1103
          %v1131 = vpop.xlane.xlu0 %1130
          %1132 = vadd.xlane.f32.xlu0 %v1104
          %v1133 = vpop.xlane.xlu0 %1132
          %1134 = vadd.xlane.f32.xlu0 %v1105
          %v1135 = vpop.xlane.xlu0 %1134
          %1136 = vadd.xlane.f32.xlu0 %v1106
          %v1137 = vpop.xlane.xlu0 %1136
          %1138 = vadd.xlane.f32.xlu0 %v1107
          %v1139 = vpop.xlane.xlu0 %1138
          %v1140 = vmul.f32 %v400, %v400
          %v1141 = vmul.f32 %v401, %v401
          %v1142 = vmul.f32 %v402, %v402
          %v1143 = vmul.f32 %v403, %v403
          %v1144 = vmul.f32 %v404, %v404
          %v1145 = vmul.f32 %v405, %v405
          %v1146 = vmul.f32 %v406, %v406
          %v1147 = vmul.f32 %v407, %v407
          %v1148 = vmul.f32 %v408, %v408
          %v1149 = vmul.f32 %v409, %v409
          %v1150 = vmul.f32 %v410, %v410
          %v1151 = vmul.f32 %v411, %v411
          %v1152 = vmul.f32 %v412, %v412
          %v1153 = vmul.f32 %v413, %v413
          %v1154 = vmul.f32 %v414, %v414
          %v1155 = vmul.f32 %v415, %v415
          %1156 = vadd.xlane.f32.xlu0 %v1140
          %v1157 = vpop.xlane.xlu0 %1156
          %1158 = vadd.xlane.f32.xlu0 %v1141
          %v1159 = vpop.xlane.xlu0 %1158
          %1160 = vadd.xlane.f32.xlu0 %v1142
          %v1161 = vpop.xlane.xlu0 %1160
          %1162 = vadd.xlane.f32.xlu0 %v1143
          %v1163 = vpop.xlane.xlu0 %1162
          %1164 = vadd.xlane.f32.xlu0 %v1144
          %v1165 = vpop.xlane.xlu0 %1164
          %1166 = vadd.xlane.f32.xlu0 %v1145
          %v1167 = vpop.xlane.xlu0 %1166
          %1168 = vadd.xlane.f32.xlu0 %v1146
          %v1169 = vpop.xlane.xlu0 %1168
          %1170 = vadd.xlane.f32.xlu0 %v1147
          %v1171 = vpop.xlane.xlu0 %1170
          %1172 = vadd.xlane.f32.xlu0 %v1148
          %v1173 = vpop.xlane.xlu0 %1172
          %1174 = vadd.xlane.f32.xlu0 %v1149
          %v1175 = vpop.xlane.xlu0 %1174
          %1176 = vadd.xlane.f32.xlu0 %v1150
          %v1177 = vpop.xlane.xlu0 %1176
          %1178 = vadd.xlane.f32.xlu0 %v1151
          %v1179 = vpop.xlane.xlu0 %1178
          %1180 = vadd.xlane.f32.xlu0 %v1152
          %v1181 = vpop.xlane.xlu0 %1180
          %1182 = vadd.xlane.f32.xlu0 %v1153
          %v1183 = vpop.xlane.xlu0 %1182
          %1184 = vadd.xlane.f32.xlu0 %v1154
          %v1185 = vpop.xlane.xlu0 %1184
          %1186 = vadd.xlane.f32.xlu0 %v1155
          %v1187 = vpop.xlane.xlu0 %1186
          %v1188 = vrsqrt.pop %v1157
          %v1189 = vmul.f32 %v1157, %v1188
          %vm1190 = vcmp.eq.f32.partialorder %v1157, inf
          %v1191 = vsel %vm1190, %v1157, %v1189
          %vm1192 = vcmp.eq.f32.partialorder %v1157, 0.0
          %v1193 = vand.u32 %v1157, 2147483648
          %v1194 = vsel %vm1192, %v1193, %v1191
          %v1195 = vrsqrt.pop %v1159
          %v1196 = vmul.f32 %v1159, %v1195
          %vm1197 = vcmp.eq.f32.partialorder %v1159, inf
          %v1198 = vsel %vm1197, %v1159, %v1196
          %vm1199 = vcmp.eq.f32.partialorder %v1159, 0.0
          %v1200 = vand.u32 %v1159, 2147483648
          %v1201 = vsel %vm1199, %v1200, %v1198
          %v1202 = vrsqrt.pop %v1161
          %v1203 = vmul.f32 %v1161, %v1202
          %vm1204 = vcmp.eq.f32.partialorder %v1161, inf
          %v1205 = vsel %vm1204, %v1161, %v1203
          %vm1206 = vcmp.eq.f32.partialorder %v1161, 0.0
          %v1207 = vand.u32 %v1161, 2147483648
          %v1208 = vsel %vm1206, %v1207, %v1205
          %v1209 = vrsqrt.pop %v1163
          %v1210 = vmul.f32 %v1163, %v1209
          %vm1211 = vcmp.eq.f32.partialorder %v1163, inf
          %v1212 = vsel %vm1211, %v1163, %v1210
          %vm1213 = vcmp.eq.f32.partialorder %v1163, 0.0
          %v1214 = vand.u32 %v1163, 2147483648
          %v1215 = vsel %vm1213, %v1214, %v1212
          %v1216 = vrsqrt.pop %v1165
          %v1217 = vmul.f32 %v1165, %v1216
          %vm1218 = vcmp.eq.f32.partialorder %v1165, inf
          %v1219 = vsel %vm1218, %v1165, %v1217
          %vm1220 = vcmp.eq.f32.partialorder %v1165, 0.0
          %v1221 = vand.u32 %v1165, 2147483648
          %v1222 = vsel %vm1220, %v1221, %v1219
          %v1223 = vrsqrt.pop %v1167
          %v1224 = vmul.f32 %v1167, %v1223
          %vm1225 = vcmp.eq.f32.partialorder %v1167, inf
          %v1226 = vsel %vm1225, %v1167, %v1224
          %vm1227 = vcmp.eq.f32.partialorder %v1167, 0.0
          %v1228 = vand.u32 %v1167, 2147483648
          %v1229 = vsel %vm1227, %v1228, %v1226
          %v1230 = vrsqrt.pop %v1169
          %v1231 = vmul.f32 %v1169, %v1230
          %vm1232 = vcmp.eq.f32.partialorder %v1169, inf
          %v1233 = vsel %vm1232, %v1169, %v1231
          %vm1234 = vcmp.eq.f32.partialorder %v1169, 0.0
          %v1235 = vand.u32 %v1169, 2147483648
          %v1236 = vsel %vm1234, %v1235, %v1233
          %v1237 = vrsqrt.pop %v1171
          %v1238 = vmul.f32 %v1171, %v1237
          %vm1239 = vcmp.eq.f32.partialorder %v1171, inf
          %v1240 = vsel %vm1239, %v1171, %v1238
          %vm1241 = vcmp.eq.f32.partialorder %v1171, 0.0
          %v1242 = vand.u32 %v1171, 2147483648
          %v1243 = vsel %vm1241, %v1242, %v1240
          %v1244 = vrsqrt.pop %v1173
          %v1245 = vmul.f32 %v1173, %v1244
          %vm1246 = vcmp.eq.f32.partialorder %v1173, inf
          %v1247 = vsel %vm1246, %v1173, %v1245
          %vm1248 = vcmp.eq.f32.partialorder %v1173, 0.0
          %v1249 = vand.u32 %v1173, 2147483648
          %v1250 = vsel %vm1248, %v1249, %v1247
          %v1251 = vrsqrt.pop %v1175
          %v1252 = vmul.f32 %v1175, %v1251
          %vm1253 = vcmp.eq.f32.partialorder %v1175, inf
          %v1254 = vsel %vm1253, %v1175, %v1252
          %vm1255 = vcmp.eq.f32.partialorder %v1175, 0.0
          %v1256 = vand.u32 %v1175, 2147483648
          %v1257 = vsel %vm1255, %v1256, %v1254
          %v1258 = vrsqrt.pop %v1177
          %v1259 = vmul.f32 %v1177, %v1258
          %vm1260 = vcmp.eq.f32.partialorder %v1177, inf
          %v1261 = vsel %vm1260, %v1177, %v1259
          %vm1262 = vcmp.eq.f32.partialorder %v1177, 0.0
          %v1263 = vand.u32 %v1177, 2147483648
          %v1264 = vsel %vm1262, %v1263, %v1261
          %v1265 = vrsqrt.pop %v1179
          %v1266 = vmul.f32 %v1179, %v1265
          %vm1267 = vcmp.eq.f32.partialorder %v1179, inf
          %v1268 = vsel %vm1267, %v1179, %v1266
          %vm1269 = vcmp.eq.f32.partialorder %v1179, 0.0
          %v1270 = vand.u32 %v1179, 2147483648
          %v1271 = vsel %vm1269, %v1270, %v1268
          %v1272 = vrsqrt.pop %v1181
          %v1273 = vmul.f32 %v1181, %v1272
          %vm1274 = vcmp.eq.f32.partialorder %v1181, inf
          %v1275 = vsel %vm1274, %v1181, %v1273
          %vm1276 = vcmp.eq.f32.partialorder %v1181, 0.0
          %v1277 = vand.u32 %v1181, 2147483648
          %v1278 = vsel %vm1276, %v1277, %v1275
          %v1279 = vrsqrt.pop %v1183
          %v1280 = vmul.f32 %v1183, %v1279
          %vm1281 = vcmp.eq.f32.partialorder %v1183, inf
          %v1282 = vsel %vm1281, %v1183, %v1280
          %vm1283 = vcmp.eq.f32.partialorder %v1183, 0.0
          %v1284 = vand.u32 %v1183, 2147483648
          %v1285 = vsel %vm1283, %v1284, %v1282
          %v1286 = vrsqrt.pop %v1185
          %v1287 = vmul.f32 %v1185, %v1286
          %vm1288 = vcmp.eq.f32.partialorder %v1185, inf
          %v1289 = vsel %vm1288, %v1185, %v1287
          %vm1290 = vcmp.eq.f32.partialorder %v1185, 0.0
          %v1291 = vand.u32 %v1185, 2147483648
          %v1292 = vsel %vm1290, %v1291, %v1289
          %v1293 = vrsqrt.pop %v1187
          %v1294 = vmul.f32 %v1187, %v1293
          %vm1295 = vcmp.eq.f32.partialorder %v1187, inf
          %v1296 = vsel %vm1295, %v1187, %v1294
          %vm1297 = vcmp.eq.f32.partialorder %v1187, 0.0
          %v1298 = vand.u32 %v1187, 2147483648
          %v1299 = vsel %vm1297, %v1298, %v1296
          %v1300 = vmax.f32 %v1194, 1e-12
          %v1301 = vmax.f32 %v1201, 1e-12
          %v1302 = vmax.f32 %v1208, 1e-12
          %v1303 = vmax.f32 %v1215, 1e-12
          %v1304 = vmax.f32 %v1222, 1e-12
          %v1305 = vmax.f32 %v1229, 1e-12
          %v1306 = vmax.f32 %v1236, 1e-12
          %v1307 = vmax.f32 %v1243, 1e-12
          %v1308 = vmax.f32 %v1250, 1e-12
          %v1309 = vmax.f32 %v1257, 1e-12
          %v1310 = vmax.f32 %v1264, 1e-12
          %v1311 = vmax.f32 %v1271, 1e-12
          %v1312 = vmax.f32 %v1278, 1e-12
          %v1313 = vmax.f32 %v1285, 1e-12
          %v1314 = vmax.f32 %v1292, 1e-12
          %v1315 = vmax.f32 %v1299, 1e-12
          %v1316 = vrcp.pop %v1300
          %v1317 = vmul.f32 1.0, %v1316
          %v1318 = vrcp.pop %v1301
          %v1319 = vmul.f32 1.0, %v1318
          %v1320 = vrcp.pop %v1302
          %v1321 = vmul.f32 1.0, %v1320
          %v1322 = vrcp.pop %v1303
          %v1323 = vmul.f32 1.0, %v1322
          %v1324 = vrcp.pop %v1304
          %v1325 = vmul.f32 1.0, %v1324
          %v1326 = vrcp.pop %v1305
          %v1327 = vmul.f32 1.0, %v1326
          %v1328 = vrcp.pop %v1306
          %v1329 = vmul.f32 1.0, %v1328
          %v1330 = vrcp.pop %v1307
          %v1331 = vmul.f32 1.0, %v1330
          %v1332 = vrcp.pop %v1308
          %v1333 = vmul.f32 1.0, %v1332
          %v1334 = vrcp.pop %v1309
          %v1335 = vmul.f32 1.0, %v1334
          %v1336 = vrcp.pop %v1310
          %v1337 = vmul.f32 1.0, %v1336
          %v1338 = vrcp.pop %v1311
          %v1339 = vmul.f32 1.0, %v1338
          %v1340 = vrcp.pop %v1312
          %v1341 = vmul.f32 1.0, %v1340
          %v1342 = vrcp.pop %v1313
          %v1343 = vmul.f32 1.0, %v1342
          %v1344 = vrcp.pop %v1314
          %v1345 = vmul.f32 1.0, %v1344
          %v1346 = vrcp.pop %v1315
          %v1347 = vmul.f32 1.0, %v1346
          %v1348 = vmul.f32 %v1109, %v577
          %v1349 = vmul.f32 %v1111, %v578
          %v1350 = vmul.f32 %v1113, %v579
          %v1351 = vmul.f32 %v1115, %v580
          %v1352 = vmul.f32 %v1117, %v581
          %v1353 = vmul.f32 %v1119, %v582
          %v1354 = vmul.f32 %v1121, %v583
          %v1355 = vmul.f32 %v1123, %v584
          %v1356 = vmul.f32 %v1125, %v585
          %v1357 = vmul.f32 %v1127, %v586
          %v1358 = vmul.f32 %v1129, %v587
          %v1359 = vmul.f32 %v1131, %v588
          %v1360 = vmul.f32 %v1133, %v589
          %v1361 = vmul.f32 %v1135, %v590
          %v1362 = vmul.f32 %v1137, %v591
          %v1363 = vmul.f32 %v1139, %v592
          %v1364 = vmul.f32 %v1348, %v1317
          %v1365 = vmul.f32 %v1349, %v1319
          %v1366 = vmul.f32 %v1350, %v1321
          %v1367 = vmul.f32 %v1351, %v1323
          %v1368 = vmul.f32 %v1352, %v1325
          %v1369 = vmul.f32 %v1353, %v1327
          %v1370 = vmul.f32 %v1354, %v1329
          %v1371 = vmul.f32 %v1355, %v1331
          %v1372 = vmul.f32 %v1356, %v1333
          %v1373 = vmul.f32 %v1357, %v1335
          %v1374 = vmul.f32 %v1358, %v1337
          %v1375 = vmul.f32 %v1359, %v1339
          %v1376 = vmul.f32 %v1360, %v1341
          %v1377 = vmul.f32 %v1361, %v1343
          %v1378 = vmul.f32 %v1362, %v1345
          %v1379 = vmul.f32 %v1363, %v1347
          %1380 = vst.msk [vmem:[#allocation4] sm:$0xff] %vm1055, %v1364
          %1381 = vst.msk [vmem:[#allocation4 + $0x8] sm:$0xff] %vm1055, %v1365
          %1382 = vst.msk [vmem:[#allocation4 + $0x10] sm:$0xff] %vm1055, %v1366
          %1383 = vst.msk [vmem:[#allocation4 + $0x18] sm:$0xff] %vm1055, %v1367
          %1384 = vst.msk [vmem:[#allocation4 + $0x20] sm:$0xff] %vm1055, %v1368
          %1385 = vst.msk [vmem:[#allocation4 + $0x28] sm:$0xff] %vm1055, %v1369
          %1386 = vst.msk [vmem:[#allocation4 + $0x30] sm:$0xff] %vm1055, %v1370
          %1387 = vst.msk [vmem:[#allocation4 + $0x38] sm:$0xff] %vm1055, %v1371
          %1388 = vst.msk [vmem:[#allocation4 + $0x40] sm:$0xff] %vm1055, %v1372
          %1389 = vst.msk [vmem:[#allocation4 + $0x48] sm:$0xff] %vm1055, %v1373
          %1390 = vst.msk [vmem:[#allocation4 + $0x50] sm:$0xff] %vm1055, %v1374
          %1391 = vst.msk [vmem:[#allocation4 + $0x58] sm:$0xff] %vm1055, %v1375
          %1392 = vst.msk [vmem:[#allocation4 + $0x60] sm:$0xff] %vm1055, %v1376
          %1393 = vst.msk [vmem:[#allocation4 + $0x68] sm:$0xff] %vm1055, %v1377
          %1394 = vst.msk [vmem:[#allocation4 + $0x70] sm:$0xff] %vm1055, %v1378
          %1395 = vst.msk [vmem:[#allocation4 + $0x78] sm:$0xff] %vm1055, %v1379
        $region52: #{tpu_custom_call.1} parent=39 // pred_fallthru
          _
        %p1396 = scmp.eq.s32.totalorder %s24, 2
        // Predicated region
        $region53: #{tpu_custom_call.1} parent=39 // pred_check
          %p1397 = pneg %p1396
        $region54: #{tpu_custom_call.1} parent=39 // pred_check_branch
          %1399 = sbr.rel (%p1397) target = $region56
        $region55: #{tpu_custom_call.1} parent=39 // pred_region
          %v1400 = vld [vmem:[#allocation2] sm:$0xff]
          %v1401 = vld [vmem:[#allocation2 + $0x8] sm:$0xff]
          %v1402 = vld [vmem:[#allocation2 + $0x10] sm:$0xff]
          %v1403 = vld [vmem:[#allocation2 + $0x18] sm:$0xff]
          %v1404 = vld [vmem:[#allocation2 + $0x20] sm:$0xff]
          %v1405 = vld [vmem:[#allocation2 + $0x28] sm:$0xff]
          %v1406 = vld [vmem:[#allocation2 + $0x30] sm:$0xff]
          %v1407 = vld [vmem:[#allocation2 + $0x38] sm:$0xff]
          %v1408 = vld [vmem:[#allocation2 + $0x40] sm:$0xff]
          %v1409 = vld [vmem:[#allocation2 + $0x48] sm:$0xff]
          %v1410 = vld [vmem:[#allocation2 + $0x50] sm:$0xff]
          %v1411 = vld [vmem:[#allocation2 + $0x58] sm:$0xff]
          %v1412 = vld [vmem:[#allocation2 + $0x60] sm:$0xff]
          %v1413 = vld [vmem:[#allocation2 + $0x68] sm:$0xff]
          %v1414 = vld [vmem:[#allocation2 + $0x70] sm:$0xff]
          %v1415 = vld [vmem:[#allocation2 + $0x78] sm:$0xff]
          %v1416 = vld [vmem:[#allocation3] sm:$0xff]
          %v1417 = vld [vmem:[#allocation3 + $0x8] sm:$0xff]
          %v1418 = vld [vmem:[#allocation3 + $0x10] sm:$0xff]
          %v1419 = vld [vmem:[#allocation3 + $0x18] sm:$0xff]
          %v1420 = vld [vmem:[#allocation3 + $0x20] sm:$0xff]
          %v1421 = vld [vmem:[#allocation3 + $0x28] sm:$0xff]
          %v1422 = vld [vmem:[#allocation3 + $0x30] sm:$0xff]
          %v1423 = vld [vmem:[#allocation3 + $0x38] sm:$0xff]
          %v1424 = vld [vmem:[#allocation3 + $0x40] sm:$0xff]
          %v1425 = vld [vmem:[#allocation3 + $0x48] sm:$0xff]
          %v1426 = vld [vmem:[#allocation3 + $0x50] sm:$0xff]
          %v1427 = vld [vmem:[#allocation3 + $0x58] sm:$0xff]
          %v1428 = vld [vmem:[#allocation3 + $0x60] sm:$0xff]
          %v1429 = vld [vmem:[#allocation3 + $0x68] sm:$0xff]
          %v1430 = vld [vmem:[#allocation3 + $0x70] sm:$0xff]
          %v1431 = vld [vmem:[#allocation3 + $0x78] sm:$0xff]
          %v1432 = vlog2.pop %v1416
          %v1433 = vmul.f32 %v1432, 0.6931472
          %v1434 = vlog2.pop %v1417
          %v1435 = vmul.f32 %v1434, 0.6931472
          %v1436 = vlog2.pop %v1418
          %v1437 = vmul.f32 %v1436, 0.6931472
          %v1438 = vlog2.pop %v1419
          %v1439 = vmul.f32 %v1438, 0.6931472
          %v1440 = vlog2.pop %v1420
          %v1441 = vmul.f32 %v1440, 0.6931472
          %v1442 = vlog2.pop %v1421
          %v1443 = vmul.f32 %v1442, 0.6931472
          %v1444 = vlog2.pop %v1422
          %v1445 = vmul.f32 %v1444, 0.6931472
          %v1446 = vlog2.pop %v1423
          %v1447 = vmul.f32 %v1446, 0.6931472
          %v1448 = vlog2.pop %v1424
          %v1449 = vmul.f32 %v1448, 0.6931472
          %v1450 = vlog2.pop %v1425
          %v1451 = vmul.f32 %v1450, 0.6931472
          %v1452 = vlog2.pop %v1426
          %v1453 = vmul.f32 %v1452, 0.6931472
          %v1454 = vlog2.pop %v1427
          %v1455 = vmul.f32 %v1454, 0.6931472
          %v1456 = vlog2.pop %v1428
          %v1457 = vmul.f32 %v1456, 0.6931472
          %v1458 = vlog2.pop %v1429
          %v1459 = vmul.f32 %v1458, 0.6931472
          %v1460 = vlog2.pop %v1430
          %v1461 = vmul.f32 %v1460, 0.6931472
          %v1462 = vlog2.pop %v1431
          %v1463 = vmul.f32 %v1462, 0.6931472
          %v1464 = vadd.f32 %v1400, %v1433
          %v1465 = vadd.f32 %v1401, %v1435
          %v1466 = vadd.f32 %v1402, %v1437
          %v1467 = vadd.f32 %v1403, %v1439
          %v1468 = vadd.f32 %v1404, %v1441
          %v1469 = vadd.f32 %v1405, %v1443
          %v1470 = vadd.f32 %v1406, %v1445
          %v1471 = vadd.f32 %v1407, %v1447
          %v1472 = vadd.f32 %v1408, %v1449
          %v1473 = vadd.f32 %v1409, %v1451
          %v1474 = vadd.f32 %v1410, %v1453
          %v1475 = vadd.f32 %v1411, %v1455
          %v1476 = vadd.f32 %v1412, %v1457
          %v1477 = vadd.f32 %v1413, %v1459
          %v1478 = vadd.f32 %v1414, %v1461
          %v1479 = vadd.f32 %v1415, %v1463
          %v1480 = vld [vmem:[#allocation4] sm:$0xff]
          %v1481 = vld [vmem:[#allocation4 + $0x8] sm:$0xff]
          %v1482 = vld [vmem:[#allocation4 + $0x10] sm:$0xff]
          %v1483 = vld [vmem:[#allocation4 + $0x18] sm:$0xff]
          %v1484 = vld [vmem:[#allocation4 + $0x20] sm:$0xff]
          %v1485 = vld [vmem:[#allocation4 + $0x28] sm:$0xff]
          %v1486 = vld [vmem:[#allocation4 + $0x30] sm:$0xff]
          %v1487 = vld [vmem:[#allocation4 + $0x38] sm:$0xff]
          %v1488 = vld [vmem:[#allocation4 + $0x40] sm:$0xff]
          %v1489 = vld [vmem:[#allocation4 + $0x48] sm:$0xff]
          %v1490 = vld [vmem:[#allocation4 + $0x50] sm:$0xff]
          %v1491 = vld [vmem:[#allocation4 + $0x58] sm:$0xff]
          %v1492 = vld [vmem:[#allocation4 + $0x60] sm:$0xff]
          %v1493 = vld [vmem:[#allocation4 + $0x68] sm:$0xff]
          %v1494 = vld [vmem:[#allocation4 + $0x70] sm:$0xff]
          %v1495 = vld [vmem:[#allocation4 + $0x78] sm:$0xff]
          %v1496 = vsub.f32 %v1464, %v1480
          %v1497 = vsub.f32 %v1465, %v1481
          %v1498 = vsub.f32 %v1466, %v1482
          %v1499 = vsub.f32 %v1467, %v1483
          %v1500 = vsub.f32 %v1468, %v1484
          %v1501 = vsub.f32 %v1469, %v1485
          %v1502 = vsub.f32 %v1470, %v1486
          %v1503 = vsub.f32 %v1471, %v1487
          %v1504 = vsub.f32 %v1472, %v1488
          %v1505 = vsub.f32 %v1473, %v1489
          %v1506 = vsub.f32 %v1474, %v1490
          %v1507 = vsub.f32 %v1475, %v1491
          %v1508 = vsub.f32 %v1476, %v1492
          %v1509 = vsub.f32 %v1477, %v1493
          %v1510 = vsub.f32 %v1478, %v1494
          %v1511 = vsub.f32 %v1479, %v1495
          %1512 = vst.msk [vmem:[%s329] sm:$0xff] %vm1055, %v1496
          %1513 = vst.msk [vmem:[%s329 + $0x8] sm:$0xff] %vm1055, %v1497
          %1514 = vst.msk [vmem:[%s329 + $0x10] sm:$0xff] %vm1055, %v1498
          %1515 = vst.msk [vmem:[%s329 + $0x18] sm:$0xff] %vm1055, %v1499
          %1516 = vst.msk [vmem:[%s329 + $0x20] sm:$0xff] %vm1055, %v1500
          %1517 = vst.msk [vmem:[%s329 + $0x28] sm:$0xff] %vm1055, %v1501
          %1518 = vst.msk [vmem:[%s329 + $0x30] sm:$0xff] %vm1055, %v1502
          %1519 = vst.msk [vmem:[%s329 + $0x38] sm:$0xff] %vm1055, %v1503
          %1520 = vst.msk [vmem:[%s329 + $0x40] sm:$0xff] %vm1055, %v1504
          %1521 = vst.msk [vmem:[%s329 + $0x48] sm:$0xff] %vm1055, %v1505
          %1522 = vst.msk [vmem:[%s329 + $0x50] sm:$0xff] %vm1055, %v1506
          %1523 = vst.msk [vmem:[%s329 + $0x58] sm:$0xff] %vm1055, %v1507
          %1524 = vst.msk [vmem:[%s329 + $0x60] sm:$0xff] %vm1055, %v1508
          %1525 = vst.msk [vmem:[%s329 + $0x68] sm:$0xff] %vm1055, %v1509
          %1526 = vst.msk [vmem:[%s329 + $0x70] sm:$0xff] %vm1055, %v1510
          %1527 = vst.msk [vmem:[%s329 + $0x78] sm:$0xff] %vm1055, %v1511
        $region56: #{tpu_custom_call.1} parent=39 // pred_fallthru
          _
        %s1528 = smul.u32 16, %s23
        %p1529 = scmp.lt.s32.totalorder %s1528, 31
        %s1530 = scalar_select %p1529, %s1528, 31
        %s1531 = smul.addr %s1530, 8
        %s1532 = scalar_lea.vmem %s5, %s1531
        // Predicated region
        $region57: #{tpu_custom_call.1} parent=39 // pred_check
          %p1533 = pneg %p179
        $region58: #{tpu_custom_call.1} parent=39 // pred_check_branch
          %1535 = sbr.rel (%p1533) target = $region60
        $region59: #{tpu_custom_call.1} parent=39 // pred_region
          %s1536 = smul.u32 16, %s23
        $region60: #{tpu_custom_call.1} parent=39 // pred_fallthru
          _
      $region40: #{tpu_custom_call.1} parent=5 // pred_fallthru
        _
      %p1537 = scmp.le.s32.totalorder 2, %s14
      // Predicated region
      $region61: #{tpu_custom_call.1} parent=5 // pred_check
        %p1538 = pneg %p1537
      $region62: #{tpu_custom_call.1} parent=5 // pred_check_branch
        %1540 = sbr.rel (%p1538) target = $region64
      $region63: #{tpu_custom_call.1} parent=5 // pred_region
        %s1541 = ssub.s32 %s14, 2
        // Predicated region
        $region65: #{tpu_custom_call.1} parent=63 // pred_check
          %p1542 = pneg %p185
        $region66: #{tpu_custom_call.1} parent=63 // pred_check_branch
          %1544 = sbr.rel (%p1542) target = $region68
        $region67: #{tpu_custom_call.1} parent=63 // pred_region
          %s1545 = smul.u32 16, %s25
          %p1546 = scmp.lt.s32.totalorder %s1545, 31
          %s1547 = scalar_select %p1546, %s1545, 31
          %s1548 = smul.addr %s1547, 8
          %s1549 = scalar_lea.vmem %s5, %s1548
        $region68: #{tpu_custom_call.1} parent=63 // pred_fallthru
          _
      $region64: #{tpu_custom_call.1} parent=5 // pred_fallthru
        _
    $region6: #{tpu_custom_call.1} parent=1 // loop_footer
      %s18 = sadd.s32 1, %s14
    $region7: #{tpu_custom_call.1} parent=1 // loop_footer_branch
      %13 = sbr.rel target = $region3
    $region8: #{tpu_custom_call.1} parent=1 // loop_exit
      _
    %1550 = vsyncpa [#allocation6], 1
    %s1551 = scalar_lea.sflag [#allocation6], 1
    %1552 = vsyncpa %s1551, 1

</llo_original>
